<compile_context>
chip_gen: v7x
topology: tpu7x:2x2x1
jax: 0.10.0
libtpu: 0.0.40
codegen_flags: <defaults>
</compile_context>

<pallas_src>
import functools

import jax
import jax.numpy as jnp
from jax import lax
from jax.experimental import pallas as pl
from jax.experimental.pallas import tpu as pltpu

BN_EPS = 1e-5


def _model0_kernel(x_ref, len_ref, wih_ref, bih_ref, whh_ref, bhh_ref,
                   wlin_ref, blin_ref, gamma_ref, beta_ref, wout_ref, bout_ref,
                   out_ref, gih_ref, *, T, B, H):
    # ---- Hoisted input projection: one matmul over all timesteps (M = T*B).
    gih_ref[...] = (jnp.dot(x_ref[...], wih_ref[...],
                            preferred_element_type=jnp.float32)
                    + bih_ref[...])                       # (T*B, 3H)

    lengths = len_ref[...]                                # (B, 1) int32
    whh = whh_ref[...]                                    # (H, 3H)
    bhh = bhh_ref[...]                                    # (1, 3H)

    # ---- Serial GRU recurrence (only the h @ W_hh dot is on the chain).
    def step(t, carry):
        h, ssum, smax = carry
        g_ih = gih_ref[pl.ds(t * B, B), :]                # (B, 3H), bias folded in
        g_hh = jnp.dot(h, whh, preferred_element_type=jnp.float32) + bhh
        r = jax.nn.sigmoid(g_ih[:, 0:H] + g_hh[:, 0:H])
        z = jax.nn.sigmoid(g_ih[:, H:2 * H] + g_hh[:, H:2 * H])
        n = jnp.tanh(g_ih[:, 2 * H:3 * H] + r * g_hh[:, 2 * H:3 * H])
        h_new = (1.0 - z) * n + z * h

        valid = t < lengths                               # (B, 1) bool
        h = jnp.where(valid, h_new, h)                    # freeze after len-1
        out_t = jnp.where(valid, h_new, 0.0)              # padded rnn_out == 0
        return h, ssum + out_t, jnp.maximum(smax, out_t)

    zeros = jnp.zeros((B, H), jnp.float32)
    h_fin, ssum, smax = lax.fori_loop(
        0, T, step,
        (zeros, zeros, jnp.full((B, H), -jnp.inf, jnp.float32)),
        unroll=True)

    # ---- Pooling over the padded (length-T) output, like adaptive_*_pool1d.
    avg_pool = ssum * (1.0 / T)
    max_pool = smax

    # ---- Linear(3H -> 2H) as three summed dots (no lane concat), then tanh.
    pre = (jnp.dot(h_fin, wlin_ref[0], preferred_element_type=jnp.float32)
           + jnp.dot(avg_pool, wlin_ref[1], preferred_element_type=jnp.float32)
           + jnp.dot(max_pool, wlin_ref[2], preferred_element_type=jnp.float32)
           + blin_ref[...])
    ln = jnp.tanh(pre)                                    # (B, 2H)

    # ---- BatchNorm1d (training-mode batch statistics, biased variance).
    mean = jnp.mean(ln, axis=0, keepdims=True)
    var = jnp.mean((ln - mean) ** 2, axis=0, keepdims=True)
    bn = (ln - mean) * lax.rsqrt(var + BN_EPS) * gamma_ref[...] + beta_ref[...]

    # ---- Output head + log_softmax.
    logits = (jnp.dot(bn, wout_ref[...], preferred_element_type=jnp.float32)
              + bout_ref[...])
    m = jnp.max(logits, axis=-1, keepdims=True)
    lse = m + jnp.log(jnp.sum(jnp.exp(logits - m), axis=-1, keepdims=True))
    out_ref[...] = (logits - lse).astype(out_ref.dtype)


def model0_forward(seq, lengths, params):
    """seq: (T, B, E) f32 time-major, lengths: (B,) int32 (descending), params: dict."""
    T, B, E = seq.shape
    H = params["w_hh"].shape[0]
    n_out = params["w_out"].shape[1]

    # pad_packed_sequence yields max(lengths) steps; kernel assumes T == max(lengths)
    # so the average-pool denominator is T (asserted by the caller in __main__).
    seq2d = seq.reshape(T * B, E)
    lengths2d = lengths.astype(jnp.int32).reshape(B, 1)

    kernel = functools.partial(_model0_kernel, T=T, B=B, H=H)

    return pl.pallas_call(
        kernel,
        out_shape=jax.ShapeDtypeStruct((B, n_out), jnp.float32),
        grid_spec=pltpu.PrefetchScalarGridSpec(
            num_scalar_prefetch=0,
            grid=(1,),
            in_specs=[
                pl.BlockSpec((T * B, E), lambda i: (0, 0)),        # seq (flattened)
                pl.BlockSpec((B, 1), lambda i: (0, 0)),            # lengths
                pl.BlockSpec((E, 3 * H), lambda i: (0, 0)),        # W_ih^T
                pl.BlockSpec((1, 3 * H), lambda i: (0, 0)),        # b_ih
                pl.BlockSpec((H, 3 * H), lambda i: (0, 0)),        # W_hh^T
                pl.BlockSpec((1, 3 * H), lambda i: (0, 0)),        # b_hh
                pl.BlockSpec((3, H, 2 * H), lambda i: (0, 0, 0)),  # Linear(3H,2H)^T blocks
                pl.BlockSpec((1, 2 * H), lambda i: (0, 0)),        # lin bias
                pl.BlockSpec((1, 2 * H), lambda i: (0, 0)),        # bn gamma
                pl.BlockSpec((1, 2 * H), lambda i: (0, 0)),        # bn beta
                pl.BlockSpec((2 * H, n_out), lambda i: (0, 0)),    # out weight^T
                pl.BlockSpec((1, n_out), lambda i: (0, 0)),        # out bias
            ],
            out_specs=pl.BlockSpec((B, n_out), lambda i: (0, 0)),
            scratch_shapes=[
                pltpu.VMEM((T * B, 3 * H), jnp.float32),  # hoisted input gates
            ],
        ),
        compiler_params=pltpu.CompilerParams(
            dimension_semantics=("arbitrary",)),
    )(seq2d, lengths2d, params["w_ih"], params["b_ih"], params["w_hh"],
      params["b_hh"], params["w_lin"], params["b_lin"], params["gamma"],
      params["beta"], params["w_out"], params["b_out"])


def init_params(key, embedding_dim, n_hidden, n_out):
    """PyTorch-default-style init (uniform(-1/sqrt(fan_in))), weights pre-transposed."""
    E, H = embedding_dim, n_hidden
    keys = jax.random.split(key, 8)

    def u(kk, shape, bound):
        return jax.random.uniform(kk, shape, jnp.float32,
                                  minval=-bound, maxval=bound)

    k_rnn = 1.0 / (H ** 0.5)
    w_ih = u(keys[0], (E, 3 * H), k_rnn)        # GRU input weights (gate order r,z,n)
    w_hh = u(keys[1], (H, 3 * H), k_rnn)        # GRU recurrent weights
    b_ih = u(keys[2], (1, 3 * H), k_rnn)
    b_hh = u(keys[3], (1, 3 * H), k_rnn)

    k_lin = 1.0 / ((3 * H) ** 0.5)
    w_lin = u(keys[4], (3, H, 2 * H), k_lin)    # blocks for [h_n | avg_pool | max_pool]
    b_lin = u(keys[5], (1, 2 * H), k_lin)

    gamma = jnp.ones((1, 2 * H), jnp.float32)   # BatchNorm1d defaults
    beta = jnp.zeros((1, 2 * H), jnp.float32)

    k_out = 1.0 / ((2 * H) ** 0.5)
    w_out = u(keys[6], (2 * H, n_out), k_out)
    b_out = u(keys[7], (1, n_out), k_out)

    return {"w_ih": w_ih, "w_hh": w_hh, "b_ih": b_ih, "b_hh": b_hh,
            "w_lin": w_lin, "b_lin": b_lin, "gamma": gamma, "beta": beta,
            "w_out": w_out, "b_out": b_out}


def reference_forward(seq, lengths, params):
    """Pure-JAX reference with identical math (validates the kernel)."""
    T, B, E = seq.shape
    H = params["w_hh"].shape[0]
    h = jnp.zeros((B, H), jnp.float32)
    ssum = jnp.zeros((B, H), jnp.float32)
    smax = jnp.full((B, H), -jnp.inf, jnp.float32)
    for t in range(T):
        g_ih = seq[t] @ params["w_ih"] + params["b_ih"]
        g_hh = h @ params["w_hh"] + params["b_hh"]
        r = jax.nn.sigmoid(g_ih[:, :H] + g_hh[:, :H])
        z = jax.nn.sigmoid(g_ih[:, H:2 * H] + g_hh[:, H:2 * H])
        n = jnp.tanh(g_ih[:, 2 * H:] + r * g_hh[:, 2 * H:])
        h_new = (1.0 - z) * n + z * h
        valid = lengths[:, None] > t
        h = jnp.where(valid, h_new, h)
        out_t = jnp.where(valid, h_new, 0.0)
        ssum = ssum + out_t
        smax = jnp.maximum(smax, out_t)
    avg_pool = ssum / T
    pre = (h @ params["w_lin"][0] + avg_pool @ params["w_lin"][1]
           + smax @ params["w_lin"][2] + params["b_lin"])
    ln = jnp.tanh(pre)
    mean = jnp.mean(ln, axis=0, keepdims=True)
    var = jnp.mean((ln - mean) ** 2, axis=0, keepdims=True)
    bn = (ln - mean) / jnp.sqrt(var + BN_EPS) * params["gamma"] + params["beta"]
    logits = bn @ params["w_out"] + params["b_out"]
    return jax.nn.log_softmax(logits, axis=-1)


if __name__ == "__main__":
    embedding_dim, n_hidden, n_out = 32, 32, 8
    T, B = 8, 8   # B = 8 keeps batch sublane-aligned

    key = jax.random.PRNGKey(0)
    k_seq, k_params = jax.random.split(key)

    seq = jax.random.normal(k_seq, (T, B, embedding_dim), jnp.float32)
    # Descending lengths (pack_padded_sequence default enforce_sorted=True).
    lengths = jnp.array([8, 8, 7, 6, 5, 4, 3, 2], jnp.int32)
    assert int(jnp.max(lengths)) == T, "kernel assumes max(lengths) == T"

    params = init_params(k_params, embedding_dim, n_hidden, n_out)

    out = model0_forward(seq, lengths, params)
    out = jax.block_until_ready(out)

    ref = reference_forward(seq, lengths, params)
    assert out.shape == (B, n_out)
    assert jnp.allclose(out, ref, atol=1e-4, rtol=1e-4), (out, ref)

    print("KERNEL_OK")
</pallas_src>

<mosaic_0001>
module attributes {stable_mosaic.version = 11 : i64} {
  func.func @_model0_kernel(%arg0: i32, %arg1: memref<64x32xf32, #tpu.memory_space<vmem>>, %arg2: memref<8x1xi32, #tpu.memory_space<vmem>>, %arg3: memref<32x96xf32, #tpu.memory_space<vmem>>, %arg4: memref<1x96xf32, #tpu.memory_space<vmem>>, %arg5: memref<32x96xf32, #tpu.memory_space<vmem>>, %arg6: memref<1x96xf32, #tpu.memory_space<vmem>>, %arg7: memref<3x32x64xf32, #tpu.memory_space<vmem>>, %arg8: memref<1x64xf32, #tpu.memory_space<vmem>>, %arg9: memref<1x64xf32, #tpu.memory_space<vmem>>, %arg10: memref<1x64xf32, #tpu.memory_space<vmem>>, %arg11: memref<64x8xf32, #tpu.memory_space<vmem>>, %arg12: memref<1x8xf32, #tpu.memory_space<vmem>>, %arg13: memref<8x8xf32, #tpu.memory_space<vmem>>, %arg14: memref<64x96xf32, #tpu.memory_space<vmem>>) attributes {dimension_semantics = [#tpu.dimension_semantics<arbitrary>], iteration_bounds = array<i64: 1>, scalar_prefetch = 0 : i64, scratch_operands = 1 : i64, tpu.core_type = #tpu.core_type<tc>, window_params = [{pipeline_mode = #tpu.pipeline_mode<synchronous>, transform_indices = @transform_0, window_bounds = array<i64: 64, 32>}, {pipeline_mode = #tpu.pipeline_mode<synchronous>, transform_indices = @transform_1, window_bounds = array<i64: 8, 1>}, {pipeline_mode = #tpu.pipeline_mode<synchronous>, transform_indices = @transform_2, window_bounds = array<i64: 32, 96>}, {pipeline_mode = #tpu.pipeline_mode<synchronous>, transform_indices = @transform_3, window_bounds = array<i64: 1, 96>}, {pipeline_mode = #tpu.pipeline_mode<synchronous>, transform_indices = @transform_4, window_bounds = array<i64: 32, 96>}, {pipeline_mode = #tpu.pipeline_mode<synchronous>, transform_indices = @transform_5, window_bounds = array<i64: 1, 96>}, {pipeline_mode = #tpu.pipeline_mode<synchronous>, transform_indices = @transform_6, window_bounds = array<i64: 3, 32, 64>}, {pipeline_mode = #tpu.pipeline_mode<synchronous>, transform_indices = @transform_7, window_bounds = array<i64: 1, 64>}, {pipeline_mode = #tpu.pipeline_mode<synchronous>, transform_indices = @transform_8, window_bounds = array<i64: 1, 64>}, {pipeline_mode = #tpu.pipeline_mode<synchronous>, transform_indices = @transform_9, window_bounds = array<i64: 1, 64>}, {pipeline_mode = #tpu.pipeline_mode<synchronous>, transform_indices = @transform_10, window_bounds = array<i64: 64, 8>}, {pipeline_mode = #tpu.pipeline_mode<synchronous>, transform_indices = @transform_11, window_bounds = array<i64: 1, 8>}, {pipeline_mode = #tpu.pipeline_mode<synchronous>, transform_indices = @transform_12, window_bounds = array<i64: 8, 8>}]} {
    %c0 = arith.constant 0 : index
    %c0_0 = arith.constant 0 : index
    %0 = vector.load %arg1[%c0, %c0_0] : memref<64x32xf32, #tpu.memory_space<vmem>>, vector<64x32xf32>
    %c0_1 = arith.constant 0 : index
    %c0_2 = arith.constant 0 : index
    %1 = vector.load %arg3[%c0_1, %c0_2] : memref<32x96xf32, #tpu.memory_space<vmem>>, vector<32x96xf32>
    %cst = arith.constant dense<0.000000e+00> : vector<64x96xf32>
    %2 = tpu.matmul %0, %1, %cst {dimension_numbers = #tpu.dot_dimension_numbers<[1], [0], [0], [1], [0, 0, 1, 1], [], []>} : vector<64x32xf32>, vector<32x96xf32>, vector<64x96xf32> -> vector<64x96xf32>
    %c0_3 = arith.constant 0 : index
    %c0_4 = arith.constant 0 : index
    %3 = vector.load %arg4[%c0_3, %c0_4] : memref<1x96xf32, #tpu.memory_space<vmem>>, vector<1x96xf32>
    %4 = vector.broadcast %3 : vector<1x96xf32> to vector<64x96xf32>
    %5 = arith.addf %2, %4 : vector<64x96xf32>
    %c0_5 = arith.constant 0 : index
    %c0_6 = arith.constant 0 : index
    %6 = vector.load %arg14[%c0_5, %c0_6] : memref<64x96xf32, #tpu.memory_space<vmem>>, vector<64x96xf32>
    tpu.vector_store %arg14[%c0_5, %c0_6], %5 {strides = array<i32>} : memref<64x96xf32, #tpu.memory_space<vmem>>, vector<64x96xf32>,
    %c0_7 = arith.constant 0 : index
    %c0_8 = arith.constant 0 : index
    %7 = vector.load %arg2[%c0_7, %c0_8] : memref<8x1xi32, #tpu.memory_space<vmem>>, vector<8x1xi32>
    %c0_9 = arith.constant 0 : index
    %c0_10 = arith.constant 0 : index
    %8 = vector.load %arg5[%c0_9, %c0_10] : memref<32x96xf32, #tpu.memory_space<vmem>>, vector<32x96xf32>
    %c0_11 = arith.constant 0 : index
    %c0_12 = arith.constant 0 : index
    %9 = vector.load %arg6[%c0_11, %c0_12] : memref<1x96xf32, #tpu.memory_space<vmem>>, vector<1x96xf32>
    %cst_13 = arith.constant 0.000000e+00 : f32
    %10 = vector.broadcast %cst_13 : f32 to vector<8x32xf32>
    %cst_14 = arith.constant 0xFF800000 : f32
    %11 = vector.broadcast %cst_14 : f32 to vector<8x32xf32>
    %c0_i32 = arith.constant 0 : i32
    %c8_i32 = arith.constant 8 : i32
    %12 = arith.muli %c0_i32, %c8_i32 : i32
    %13 = arith.index_cast %12 : i32 to index
    %c0_15 = arith.constant 0 : index
    %14 = vector.load %arg14[%13, %c0_15] : memref<64x96xf32, #tpu.memory_space<vmem>>, vector<8x96xf32>
    %cst_16 = arith.constant dense<0.000000e+00> : vector<8x96xf32>
    %15 = tpu.matmul %10, %8, %cst_16 {dimension_numbers = #tpu.dot_dimension_numbers<[1], [0], [0], [1], [0, 0, 1, 1], [], []>} : vector<8x32xf32>, vector<32x96xf32>, vector<8x96xf32> -> vector<8x96xf32>
    %16 = vector.broadcast %9 : vector<1x96xf32> to vector<8x96xf32>
    %17 = arith.addf %15, %16 : vector<8x96xf32>
    %18 = vector.extract_strided_slice %14 {offsets = [0, 0], sizes = [8, 32], strides = [1, 1]} : vector<8x96xf32> to vector<8x32xf32>
    %19 = vector.extract_strided_slice %17 {offsets = [0, 0], sizes = [8, 32], strides = [1, 1]} : vector<8x96xf32> to vector<8x32xf32>
    %20 = arith.addf %18, %19 : vector<8x32xf32>
    %21 = arith.negf %20 : vector<8x32xf32>
    %22 = math.exp %21 : vector<8x32xf32>
    %cst_17 = arith.constant 1.000000e+00 : f32
    %23 = vector.broadcast %cst_17 : f32 to vector<8x32xf32>
    %24 = arith.addf %23, %22 : vector<8x32xf32>
    %25 = arith.divf %23, %24 : vector<8x32xf32>
    %26 = vector.extract_strided_slice %14 {offsets = [0, 32], sizes = [8, 32], strides = [1, 1]} : vector<8x96xf32> to vector<8x32xf32>
    %27 = vector.extract_strided_slice %17 {offsets = [0, 32], sizes = [8, 32], strides = [1, 1]} : vector<8x96xf32> to vector<8x32xf32>
    %28 = arith.addf %26, %27 : vector<8x32xf32>
    %29 = arith.negf %28 : vector<8x32xf32>
    %30 = math.exp %29 : vector<8x32xf32>
    %cst_18 = arith.constant 1.000000e+00 : f32
    %31 = vector.broadcast %cst_18 : f32 to vector<8x32xf32>
    %32 = arith.addf %31, %30 : vector<8x32xf32>
    %33 = arith.divf %31, %32 : vector<8x32xf32>
    %34 = vector.extract_strided_slice %14 {offsets = [0, 64], sizes = [8, 32], strides = [1, 1]} : vector<8x96xf32> to vector<8x32xf32>
    %35 = vector.extract_strided_slice %17 {offsets = [0, 64], sizes = [8, 32], strides = [1, 1]} : vector<8x96xf32> to vector<8x32xf32>
    %36 = arith.mulf %25, %35 : vector<8x32xf32>
    %37 = arith.addf %34, %36 : vector<8x32xf32>
    %38 = math.tanh %37 : vector<8x32xf32>
    %cst_19 = arith.constant 1.000000e+00 : f32
    %39 = vector.broadcast %cst_19 : f32 to vector<8x32xf32>
    %40 = arith.subf %39, %33 : vector<8x32xf32>
    %41 = arith.mulf %40, %38 : vector<8x32xf32>
    %42 = arith.mulf %33, %10 : vector<8x32xf32>
    %43 = arith.addf %41, %42 : vector<8x32xf32>
    %44 = vector.broadcast %c0_i32 : i32 to vector<8x1xi32>
    %45 = arith.cmpi slt, %44, %7 : vector<8x1xi32>
    %46 = vector.shape_cast %45 : vector<8x1xi1> to vector<8x1xi1>
    %47 = vector.broadcast %46 : vector<8x1xi1> to vector<8x32xi1>
    %48 = arith.select %47, %43, %10 : vector<8x32xi1>, vector<8x32xf32>
    %cst_20 = arith.constant 0.000000e+00 : f32
    %49 = vector.shape_cast %45 : vector<8x1xi1> to vector<8x1xi1>
    %50 = vector.broadcast %49 : vector<8x1xi1> to vector<8x32xi1>
    %51 = vector.broadcast %cst_20 : f32 to vector<8x32xf32>
    %52 = arith.select %50, %43, %51 : vector<8x32xi1>, vector<8x32xf32>
    %53 = arith.addf %10, %52 : vector<8x32xf32>
    %54 = arith.maximumf %11, %52 : vector<8x32xf32>
    %c1_i32 = arith.constant 1 : i32
    %c8_i32_21 = arith.constant 8 : i32
    %55 = arith.muli %c1_i32, %c8_i32_21 : i32
    %56 = arith.index_cast %55 : i32 to index
    %c0_22 = arith.constant 0 : index
    %57 = vector.load %arg14[%56, %c0_22] : memref<64x96xf32, #tpu.memory_space<vmem>>, vector<8x96xf32>
    %cst_23 = arith.constant dense<0.000000e+00> : vector<8x96xf32>
    %58 = tpu.matmul %48, %8, %cst_23 {dimension_numbers = #tpu.dot_dimension_numbers<[1], [0], [0], [1], [0, 0, 1, 1], [], []>} : vector<8x32xf32>, vector<32x96xf32>, vector<8x96xf32> -> vector<8x96xf32>
    %59 = vector.broadcast %9 : vector<1x96xf32> to vector<8x96xf32>
    %60 = arith.addf %58, %59 : vector<8x96xf32>
    %61 = vector.extract_strided_slice %57 {offsets = [0, 0], sizes = [8, 32], strides = [1, 1]} : vector<8x96xf32> to vector<8x32xf32>
    %62 = vector.extract_strided_slice %60 {offsets = [0, 0], sizes = [8, 32], strides = [1, 1]} : vector<8x96xf32> to vector<8x32xf32>
    %63 = arith.addf %61, %62 : vector<8x32xf32>
    %64 = arith.negf %63 : vector<8x32xf32>
    %65 = math.exp %64 : vector<8x32xf32>
    %cst_24 = arith.constant 1.000000e+00 : f32
    %66 = vector.broadcast %cst_24 : f32 to vector<8x32xf32>
    %67 = arith.addf %66, %65 : vector<8x32xf32>
    %68 = arith.divf %66, %67 : vector<8x32xf32>
    %69 = vector.extract_strided_slice %57 {offsets = [0, 32], sizes = [8, 32], strides = [1, 1]} : vector<8x96xf32> to vector<8x32xf32>
    %70 = vector.extract_strided_slice %60 {offsets = [0, 32], sizes = [8, 32], strides = [1, 1]} : vector<8x96xf32> to vector<8x32xf32>
    %71 = arith.addf %69, %70 : vector<8x32xf32>
    %72 = arith.negf %71 : vector<8x32xf32>
    %73 = math.exp %72 : vector<8x32xf32>
    %cst_25 = arith.constant 1.000000e+00 : f32
    %74 = vector.broadcast %cst_25 : f32 to vector<8x32xf32>
    %75 = arith.addf %74, %73 : vector<8x32xf32>
    %76 = arith.divf %74, %75 : vector<8x32xf32>
    %77 = vector.extract_strided_slice %57 {offsets = [0, 64], sizes = [8, 32], strides = [1, 1]} : vector<8x96xf32> to vector<8x32xf32>
    %78 = vector.extract_strided_slice %60 {offsets = [0, 64], sizes = [8, 32], strides = [1, 1]} : vector<8x96xf32> to vector<8x32xf32>
    %79 = arith.mulf %68, %78 : vector<8x32xf32>
    %80 = arith.addf %77, %79 : vector<8x32xf32>
    %81 = math.tanh %80 : vector<8x32xf32>
    %cst_26 = arith.constant 1.000000e+00 : f32
    %82 = vector.broadcast %cst_26 : f32 to vector<8x32xf32>
    %83 = arith.subf %82, %76 : vector<8x32xf32>
    %84 = arith.mulf %83, %81 : vector<8x32xf32>
    %85 = arith.mulf %76, %48 : vector<8x32xf32>
    %86 = arith.addf %84, %85 : vector<8x32xf32>
    %87 = vector.broadcast %c1_i32 : i32 to vector<8x1xi32>
    %88 = arith.cmpi slt, %87, %7 : vector<8x1xi32>
    %89 = vector.shape_cast %88 : vector<8x1xi1> to vector<8x1xi1>
    %90 = vector.broadcast %89 : vector<8x1xi1> to vector<8x32xi1>
    %91 = arith.select %90, %86, %48 : vector<8x32xi1>, vector<8x32xf32>
    %cst_27 = arith.constant 0.000000e+00 : f32
    %92 = vector.shape_cast %88 : vector<8x1xi1> to vector<8x1xi1>
    %93 = vector.broadcast %92 : vector<8x1xi1> to vector<8x32xi1>
    %94 = vector.broadcast %cst_27 : f32 to vector<8x32xf32>
    %95 = arith.select %93, %86, %94 : vector<8x32xi1>, vector<8x32xf32>
    %96 = arith.addf %53, %95 : vector<8x32xf32>
    %97 = arith.maximumf %54, %95 : vector<8x32xf32>
    %c2_i32 = arith.constant 2 : i32
    %c8_i32_28 = arith.constant 8 : i32
    %98 = arith.muli %c2_i32, %c8_i32_28 : i32
    %99 = arith.index_cast %98 : i32 to index
    %c0_29 = arith.constant 0 : index
    %100 = vector.load %arg14[%99, %c0_29] : memref<64x96xf32, #tpu.memory_space<vmem>>, vector<8x96xf32>
    %cst_30 = arith.constant dense<0.000000e+00> : vector<8x96xf32>
    %101 = tpu.matmul %91, %8, %cst_30 {dimension_numbers = #tpu.dot_dimension_numbers<[1], [0], [0], [1], [0, 0, 1, 1], [], []>} : vector<8x32xf32>, vector<32x96xf32>, vector<8x96xf32> -> vector<8x96xf32>
    %102 = vector.broadcast %9 : vector<1x96xf32> to vector<8x96xf32>
    %103 = arith.addf %101, %102 : vector<8x96xf32>
    %104 = vector.extract_strided_slice %100 {offsets = [0, 0], sizes = [8, 32], strides = [1, 1]} : vector<8x96xf32> to vector<8x32xf32>
    %105 = vector.extract_strided_slice %103 {offsets = [0, 0], sizes = [8, 32], strides = [1, 1]} : vector<8x96xf32> to vector<8x32xf32>
    %106 = arith.addf %104, %105 : vector<8x32xf32>
    %107 = arith.negf %106 : vector<8x32xf32>
    %108 = math.exp %107 : vector<8x32xf32>
    %cst_31 = arith.constant 1.000000e+00 : f32
    %109 = vector.broadcast %cst_31 : f32 to vector<8x32xf32>
    %110 = arith.addf %109, %108 : vector<8x32xf32>
    %111 = arith.divf %109, %110 : vector<8x32xf32>
    %112 = vector.extract_strided_slice %100 {offsets = [0, 32], sizes = [8, 32], strides = [1, 1]} : vector<8x96xf32> to vector<8x32xf32>
    %113 = vector.extract_strided_slice %103 {offsets = [0, 32], sizes = [8, 32], strides = [1, 1]} : vector<8x96xf32> to vector<8x32xf32>
    %114 = arith.addf %112, %113 : vector<8x32xf32>
    %115 = arith.negf %114 : vector<8x32xf32>
    %116 = math.exp %115 : vector<8x32xf32>
    %cst_32 = arith.constant 1.000000e+00 : f32
    %117 = vector.broadcast %cst_32 : f32 to vector<8x32xf32>
    %118 = arith.addf %117, %116 : vector<8x32xf32>
    %119 = arith.divf %117, %118 : vector<8x32xf32>
    %120 = vector.extract_strided_slice %100 {offsets = [0, 64], sizes = [8, 32], strides = [1, 1]} : vector<8x96xf32> to vector<8x32xf32>
    %121 = vector.extract_strided_slice %103 {offsets = [0, 64], sizes = [8, 32], strides = [1, 1]} : vector<8x96xf32> to vector<8x32xf32>
    %122 = arith.mulf %111, %121 : vector<8x32xf32>
    %123 = arith.addf %120, %122 : vector<8x32xf32>
    %124 = math.tanh %123 : vector<8x32xf32>
    %cst_33 = arith.constant 1.000000e+00 : f32
    %125 = vector.broadcast %cst_33 : f32 to vector<8x32xf32>
    %126 = arith.subf %125, %119 : vector<8x32xf32>
    %127 = arith.mulf %126, %124 : vector<8x32xf32>
    %128 = arith.mulf %119, %91 : vector<8x32xf32>
    %129 = arith.addf %127, %128 : vector<8x32xf32>
    %130 = vector.broadcast %c2_i32 : i32 to vector<8x1xi32>
    %131 = arith.cmpi slt, %130, %7 : vector<8x1xi32>
    %132 = vector.shape_cast %131 : vector<8x1xi1> to vector<8x1xi1>
    %133 = vector.broadcast %132 : vector<8x1xi1> to vector<8x32xi1>
    %134 = arith.select %133, %129, %91 : vector<8x32xi1>, vector<8x32xf32>
    %cst_34 = arith.constant 0.000000e+00 : f32
    %135 = vector.shape_cast %131 : vector<8x1xi1> to vector<8x1xi1>
    %136 = vector.broadcast %135 : vector<8x1xi1> to vector<8x32xi1>
    %137 = vector.broadcast %cst_34 : f32 to vector<8x32xf32>
    %138 = arith.select %136, %129, %137 : vector<8x32xi1>, vector<8x32xf32>
    %139 = arith.addf %96, %138 : vector<8x32xf32>
    %140 = arith.maximumf %97, %138 : vector<8x32xf32>
    %c3_i32 = arith.constant 3 : i32
    %c8_i32_35 = arith.constant 8 : i32
    %141 = arith.muli %c3_i32, %c8_i32_35 : i32
    %142 = arith.index_cast %141 : i32 to index
    %c0_36 = arith.constant 0 : index
    %143 = vector.load %arg14[%142, %c0_36] : memref<64x96xf32, #tpu.memory_space<vmem>>, vector<8x96xf32>
    %cst_37 = arith.constant dense<0.000000e+00> : vector<8x96xf32>
    %144 = tpu.matmul %134, %8, %cst_37 {dimension_numbers = #tpu.dot_dimension_numbers<[1], [0], [0], [1], [0, 0, 1, 1], [], []>} : vector<8x32xf32>, vector<32x96xf32>, vector<8x96xf32> -> vector<8x96xf32>
    %145 = vector.broadcast %9 : vector<1x96xf32> to vector<8x96xf32>
    %146 = arith.addf %144, %145 : vector<8x96xf32>
    %147 = vector.extract_strided_slice %143 {offsets = [0, 0], sizes = [8, 32], strides = [1, 1]} : vector<8x96xf32> to vector<8x32xf32>
    %148 = vector.extract_strided_slice %146 {offsets = [0, 0], sizes = [8, 32], strides = [1, 1]} : vector<8x96xf32> to vector<8x32xf32>
    %149 = arith.addf %147, %148 : vector<8x32xf32>
    %150 = arith.negf %149 : vector<8x32xf32>
    %151 = math.exp %150 : vector<8x32xf32>
    %cst_38 = arith.constant 1.000000e+00 : f32
    %152 = vector.broadcast %cst_38 : f32 to vector<8x32xf32>
    %153 = arith.addf %152, %151 : vector<8x32xf32>
    %154 = arith.divf %152, %153 : vector<8x32xf32>
    %155 = vector.extract_strided_slice %143 {offsets = [0, 32], sizes = [8, 32], strides = [1, 1]} : vector<8x96xf32> to vector<8x32xf32>
    %156 = vector.extract_strided_slice %146 {offsets = [0, 32], sizes = [8, 32], strides = [1, 1]} : vector<8x96xf32> to vector<8x32xf32>
    %157 = arith.addf %155, %156 : vector<8x32xf32>
    %158 = arith.negf %157 : vector<8x32xf32>
    %159 = math.exp %158 : vector<8x32xf32>
    %cst_39 = arith.constant 1.000000e+00 : f32
    %160 = vector.broadcast %cst_39 : f32 to vector<8x32xf32>
    %161 = arith.addf %160, %159 : vector<8x32xf32>
    %162 = arith.divf %160, %161 : vector<8x32xf32>
    %163 = vector.extract_strided_slice %143 {offsets = [0, 64], sizes = [8, 32], strides = [1, 1]} : vector<8x96xf32> to vector<8x32xf32>
    %164 = vector.extract_strided_slice %146 {offsets = [0, 64], sizes = [8, 32], strides = [1, 1]} : vector<8x96xf32> to vector<8x32xf32>
    %165 = arith.mulf %154, %164 : vector<8x32xf32>
    %166 = arith.addf %163, %165 : vector<8x32xf32>
    %167 = math.tanh %166 : vector<8x32xf32>
    %cst_40 = arith.constant 1.000000e+00 : f32
    %168 = vector.broadcast %cst_40 : f32 to vector<8x32xf32>
    %169 = arith.subf %168, %162 : vector<8x32xf32>
    %170 = arith.mulf %169, %167 : vector<8x32xf32>
    %171 = arith.mulf %162, %134 : vector<8x32xf32>
    %172 = arith.addf %170, %171 : vector<8x32xf32>
    %173 = vector.broadcast %c3_i32 : i32 to vector<8x1xi32>
    %174 = arith.cmpi slt, %173, %7 : vector<8x1xi32>
    %175 = vector.shape_cast %174 : vector<8x1xi1> to vector<8x1xi1>
    %176 = vector.broadcast %175 : vector<8x1xi1> to vector<8x32xi1>
    %177 = arith.select %176, %172, %134 : vector<8x32xi1>, vector<8x32xf32>
    %cst_41 = arith.constant 0.000000e+00 : f32
    %178 = vector.shape_cast %174 : vector<8x1xi1> to vector<8x1xi1>
    %179 = vector.broadcast %178 : vector<8x1xi1> to vector<8x32xi1>
    %180 = vector.broadcast %cst_41 : f32 to vector<8x32xf32>
    %181 = arith.select %179, %172, %180 : vector<8x32xi1>, vector<8x32xf32>
    %182 = arith.addf %139, %181 : vector<8x32xf32>
    %183 = arith.maximumf %140, %181 : vector<8x32xf32>
    %c4_i32 = arith.constant 4 : i32
    %c8_i32_42 = arith.constant 8 : i32
    %184 = arith.muli %c4_i32, %c8_i32_42 : i32
    %185 = arith.index_cast %184 : i32 to index
    %c0_43 = arith.constant 0 : index
    %186 = vector.load %arg14[%185, %c0_43] : memref<64x96xf32, #tpu.memory_space<vmem>>, vector<8x96xf32>
    %cst_44 = arith.constant dense<0.000000e+00> : vector<8x96xf32>
    %187 = tpu.matmul %177, %8, %cst_44 {dimension_numbers = #tpu.dot_dimension_numbers<[1], [0], [0], [1], [0, 0, 1, 1], [], []>} : vector<8x32xf32>, vector<32x96xf32>, vector<8x96xf32> -> vector<8x96xf32>
    %188 = vector.broadcast %9 : vector<1x96xf32> to vector<8x96xf32>
    %189 = arith.addf %187, %188 : vector<8x96xf32>
    %190 = vector.extract_strided_slice %186 {offsets = [0, 0], sizes = [8, 32], strides = [1, 1]} : vector<8x96xf32> to vector<8x32xf32>
    %191 = vector.extract_strided_slice %189 {offsets = [0, 0], sizes = [8, 32], strides = [1, 1]} : vector<8x96xf32> to vector<8x32xf32>
    %192 = arith.addf %190, %191 : vector<8x32xf32>
    %193 = arith.negf %192 : vector<8x32xf32>
    %194 = math.exp %193 : vector<8x32xf32>
    %cst_45 = arith.constant 1.000000e+00 : f32
    %195 = vector.broadcast %cst_45 : f32 to vector<8x32xf32>
    %196 = arith.addf %195, %194 : vector<8x32xf32>
    %197 = arith.divf %195, %196 : vector<8x32xf32>
    %198 = vector.extract_strided_slice %186 {offsets = [0, 32], sizes = [8, 32], strides = [1, 1]} : vector<8x96xf32> to vector<8x32xf32>
    %199 = vector.extract_strided_slice %189 {offsets = [0, 32], sizes = [8, 32], strides = [1, 1]} : vector<8x96xf32> to vector<8x32xf32>
    %200 = arith.addf %198, %199 : vector<8x32xf32>
    %201 = arith.negf %200 : vector<8x32xf32>
    %202 = math.exp %201 : vector<8x32xf32>
    %cst_46 = arith.constant 1.000000e+00 : f32
    %203 = vector.broadcast %cst_46 : f32 to vector<8x32xf32>
    %204 = arith.addf %203, %202 : vector<8x32xf32>
    %205 = arith.divf %203, %204 : vector<8x32xf32>
    %206 = vector.extract_strided_slice %186 {offsets = [0, 64], sizes = [8, 32], strides = [1, 1]} : vector<8x96xf32> to vector<8x32xf32>
    %207 = vector.extract_strided_slice %189 {offsets = [0, 64], sizes = [8, 32], strides = [1, 1]} : vector<8x96xf32> to vector<8x32xf32>
    %208 = arith.mulf %197, %207 : vector<8x32xf32>
    %209 = arith.addf %206, %208 : vector<8x32xf32>
    %210 = math.tanh %209 : vector<8x32xf32>
    %cst_47 = arith.constant 1.000000e+00 : f32
    %211 = vector.broadcast %cst_47 : f32 to vector<8x32xf32>
    %212 = arith.subf %211, %205 : vector<8x32xf32>
    %213 = arith.mulf %212, %210 : vector<8x32xf32>
    %214 = arith.mulf %205, %177 : vector<8x32xf32>
    %215 = arith.addf %213, %214 : vector<8x32xf32>
    %216 = vector.broadcast %c4_i32 : i32 to vector<8x1xi32>
    %217 = arith.cmpi slt, %216, %7 : vector<8x1xi32>
    %218 = vector.shape_cast %217 : vector<8x1xi1> to vector<8x1xi1>
    %219 = vector.broadcast %218 : vector<8x1xi1> to vector<8x32xi1>
    %220 = arith.select %219, %215, %177 : vector<8x32xi1>, vector<8x32xf32>
    %cst_48 = arith.constant 0.000000e+00 : f32
    %221 = vector.shape_cast %217 : vector<8x1xi1> to vector<8x1xi1>
    %222 = vector.broadcast %221 : vector<8x1xi1> to vector<8x32xi1>
    %223 = vector.broadcast %cst_48 : f32 to vector<8x32xf32>
    %224 = arith.select %222, %215, %223 : vector<8x32xi1>, vector<8x32xf32>
    %225 = arith.addf %182, %224 : vector<8x32xf32>
    %226 = arith.maximumf %183, %224 : vector<8x32xf32>
    %c5_i32 = arith.constant 5 : i32
    %c8_i32_49 = arith.constant 8 : i32
    %227 = arith.muli %c5_i32, %c8_i32_49 : i32
    %228 = arith.index_cast %227 : i32 to index
    %c0_50 = arith.constant 0 : index
    %229 = vector.load %arg14[%228, %c0_50] : memref<64x96xf32, #tpu.memory_space<vmem>>, vector<8x96xf32>
    %cst_51 = arith.constant dense<0.000000e+00> : vector<8x96xf32>
    %230 = tpu.matmul %220, %8, %cst_51 {dimension_numbers = #tpu.dot_dimension_numbers<[1], [0], [0], [1], [0, 0, 1, 1], [], []>} : vector<8x32xf32>, vector<32x96xf32>, vector<8x96xf32> -> vector<8x96xf32>
    %231 = vector.broadcast %9 : vector<1x96xf32> to vector<8x96xf32>
    %232 = arith.addf %230, %231 : vector<8x96xf32>
    %233 = vector.extract_strided_slice %229 {offsets = [0, 0], sizes = [8, 32], strides = [1, 1]} : vector<8x96xf32> to vector<8x32xf32>
    %234 = vector.extract_strided_slice %232 {offsets = [0, 0], sizes = [8, 32], strides = [1, 1]} : vector<8x96xf32> to vector<8x32xf32>
    %235 = arith.addf %233, %234 : vector<8x32xf32>
    %236 = arith.negf %235 : vector<8x32xf32>
    %237 = math.exp %236 : vector<8x32xf32>
    %cst_52 = arith.constant 1.000000e+00 : f32
    %238 = vector.broadcast %cst_52 : f32 to vector<8x32xf32>
    %239 = arith.addf %238, %237 : vector<8x32xf32>
    %240 = arith.divf %238, %239 : vector<8x32xf32>
    %241 = vector.extract_strided_slice %229 {offsets = [0, 32], sizes = [8, 32], strides = [1, 1]} : vector<8x96xf32> to vector<8x32xf32>
    %242 = vector.extract_strided_slice %232 {offsets = [0, 32], sizes = [8, 32], strides = [1, 1]} : vector<8x96xf32> to vector<8x32xf32>
    %243 = arith.addf %241, %242 : vector<8x32xf32>
    %244 = arith.negf %243 : vector<8x32xf32>
    %245 = math.exp %244 : vector<8x32xf32>
    %cst_53 = arith.constant 1.000000e+00 : f32
    %246 = vector.broadcast %cst_53 : f32 to vector<8x32xf32>
    %247 = arith.addf %246, %245 : vector<8x32xf32>
    %248 = arith.divf %246, %247 : vector<8x32xf32>
    %249 = vector.extract_strided_slice %229 {offsets = [0, 64], sizes = [8, 32], strides = [1, 1]} : vector<8x96xf32> to vector<8x32xf32>
    %250 = vector.extract_strided_slice %232 {offsets = [0, 64], sizes = [8, 32], strides = [1, 1]} : vector<8x96xf32> to vector<8x32xf32>
    %251 = arith.mulf %240, %250 : vector<8x32xf32>
    %252 = arith.addf %249, %251 : vector<8x32xf32>
    %253 = math.tanh %252 : vector<8x32xf32>
    %cst_54 = arith.constant 1.000000e+00 : f32
    %254 = vector.broadcast %cst_54 : f32 to vector<8x32xf32>
    %255 = arith.subf %254, %248 : vector<8x32xf32>
    %256 = arith.mulf %255, %253 : vector<8x32xf32>
    %257 = arith.mulf %248, %220 : vector<8x32xf32>
    %258 = arith.addf %256, %257 : vector<8x32xf32>
    %259 = vector.broadcast %c5_i32 : i32 to vector<8x1xi32>
    %260 = arith.cmpi slt, %259, %7 : vector<8x1xi32>
    %261 = vector.shape_cast %260 : vector<8x1xi1> to vector<8x1xi1>
    %262 = vector.broadcast %261 : vector<8x1xi1> to vector<8x32xi1>
    %263 = arith.select %262, %258, %220 : vector<8x32xi1>, vector<8x32xf32>
    %cst_55 = arith.constant 0.000000e+00 : f32
    %264 = vector.shape_cast %260 : vector<8x1xi1> to vector<8x1xi1>
    %265 = vector.broadcast %264 : vector<8x1xi1> to vector<8x32xi1>
    %266 = vector.broadcast %cst_55 : f32 to vector<8x32xf32>
    %267 = arith.select %265, %258, %266 : vector<8x32xi1>, vector<8x32xf32>
    %268 = arith.addf %225, %267 : vector<8x32xf32>
    %269 = arith.maximumf %226, %267 : vector<8x32xf32>
    %c6_i32 = arith.constant 6 : i32
    %c8_i32_56 = arith.constant 8 : i32
    %270 = arith.muli %c6_i32, %c8_i32_56 : i32
    %271 = arith.index_cast %270 : i32 to index
    %c0_57 = arith.constant 0 : index
    %272 = vector.load %arg14[%271, %c0_57] : memref<64x96xf32, #tpu.memory_space<vmem>>, vector<8x96xf32>
    %cst_58 = arith.constant dense<0.000000e+00> : vector<8x96xf32>
    %273 = tpu.matmul %263, %8, %cst_58 {dimension_numbers = #tpu.dot_dimension_numbers<[1], [0], [0], [1], [0, 0, 1, 1], [], []>} : vector<8x32xf32>, vector<32x96xf32>, vector<8x96xf32> -> vector<8x96xf32>
    %274 = vector.broadcast %9 : vector<1x96xf32> to vector<8x96xf32>
    %275 = arith.addf %273, %274 : vector<8x96xf32>
    %276 = vector.extract_strided_slice %272 {offsets = [0, 0], sizes = [8, 32], strides = [1, 1]} : vector<8x96xf32> to vector<8x32xf32>
    %277 = vector.extract_strided_slice %275 {offsets = [0, 0], sizes = [8, 32], strides = [1, 1]} : vector<8x96xf32> to vector<8x32xf32>
    %278 = arith.addf %276, %277 : vector<8x32xf32>
    %279 = arith.negf %278 : vector<8x32xf32>
    %280 = math.exp %279 : vector<8x32xf32>
    %cst_59 = arith.constant 1.000000e+00 : f32
    %281 = vector.broadcast %cst_59 : f32 to vector<8x32xf32>
    %282 = arith.addf %281, %280 : vector<8x32xf32>
    %283 = arith.divf %281, %282 : vector<8x32xf32>
    %284 = vector.extract_strided_slice %272 {offsets = [0, 32], sizes = [8, 32], strides = [1, 1]} : vector<8x96xf32> to vector<8x32xf32>
    %285 = vector.extract_strided_slice %275 {offsets = [0, 32], sizes = [8, 32], strides = [1, 1]} : vector<8x96xf32> to vector<8x32xf32>
    %286 = arith.addf %284, %285 : vector<8x32xf32>
    %287 = arith.negf %286 : vector<8x32xf32>
    %288 = math.exp %287 : vector<8x32xf32>
    %cst_60 = arith.constant 1.000000e+00 : f32
    %289 = vector.broadcast %cst_60 : f32 to vector<8x32xf32>
    %290 = arith.addf %289, %288 : vector<8x32xf32>
    %291 = arith.divf %289, %290 : vector<8x32xf32>
    %292 = vector.extract_strided_slice %272 {offsets = [0, 64], sizes = [8, 32], strides = [1, 1]} : vector<8x96xf32> to vector<8x32xf32>
    %293 = vector.extract_strided_slice %275 {offsets = [0, 64], sizes = [8, 32], strides = [1, 1]} : vector<8x96xf32> to vector<8x32xf32>
    %294 = arith.mulf %283, %293 : vector<8x32xf32>
    %295 = arith.addf %292, %294 : vector<8x32xf32>
    %296 = math.tanh %295 : vector<8x32xf32>
    %cst_61 = arith.constant 1.000000e+00 : f32
    %297 = vector.broadcast %cst_61 : f32 to vector<8x32xf32>
    %298 = arith.subf %297, %291 : vector<8x32xf32>
    %299 = arith.mulf %298, %296 : vector<8x32xf32>
    %300 = arith.mulf %291, %263 : vector<8x32xf32>
    %301 = arith.addf %299, %300 : vector<8x32xf32>
    %302 = vector.broadcast %c6_i32 : i32 to vector<8x1xi32>
    %303 = arith.cmpi slt, %302, %7 : vector<8x1xi32>
    %304 = vector.shape_cast %303 : vector<8x1xi1> to vector<8x1xi1>
    %305 = vector.broadcast %304 : vector<8x1xi1> to vector<8x32xi1>
    %306 = arith.select %305, %301, %263 : vector<8x32xi1>, vector<8x32xf32>
    %cst_62 = arith.constant 0.000000e+00 : f32
    %307 = vector.shape_cast %303 : vector<8x1xi1> to vector<8x1xi1>
    %308 = vector.broadcast %307 : vector<8x1xi1> to vector<8x32xi1>
    %309 = vector.broadcast %cst_62 : f32 to vector<8x32xf32>
    %310 = arith.select %308, %301, %309 : vector<8x32xi1>, vector<8x32xf32>
    %311 = arith.addf %268, %310 : vector<8x32xf32>
    %312 = arith.maximumf %269, %310 : vector<8x32xf32>
    %c7_i32 = arith.constant 7 : i32
    %c8_i32_63 = arith.constant 8 : i32
    %313 = arith.muli %c7_i32, %c8_i32_63 : i32
    %314 = arith.index_cast %313 : i32 to index
    %c0_64 = arith.constant 0 : index
    %315 = vector.load %arg14[%314, %c0_64] : memref<64x96xf32, #tpu.memory_space<vmem>>, vector<8x96xf32>
    %cst_65 = arith.constant dense<0.000000e+00> : vector<8x96xf32>
    %316 = tpu.matmul %306, %8, %cst_65 {dimension_numbers = #tpu.dot_dimension_numbers<[1], [0], [0], [1], [0, 0, 1, 1], [], []>} : vector<8x32xf32>, vector<32x96xf32>, vector<8x96xf32> -> vector<8x96xf32>
    %317 = vector.broadcast %9 : vector<1x96xf32> to vector<8x96xf32>
    %318 = arith.addf %316, %317 : vector<8x96xf32>
    %319 = vector.extract_strided_slice %315 {offsets = [0, 0], sizes = [8, 32], strides = [1, 1]} : vector<8x96xf32> to vector<8x32xf32>
    %320 = vector.extract_strided_slice %318 {offsets = [0, 0], sizes = [8, 32], strides = [1, 1]} : vector<8x96xf32> to vector<8x32xf32>
    %321 = arith.addf %319, %320 : vector<8x32xf32>
    %322 = arith.negf %321 : vector<8x32xf32>
    %323 = math.exp %322 : vector<8x32xf32>
    %cst_66 = arith.constant 1.000000e+00 : f32
    %324 = vector.broadcast %cst_66 : f32 to vector<8x32xf32>
    %325 = arith.addf %324, %323 : vector<8x32xf32>
    %326 = arith.divf %324, %325 : vector<8x32xf32>
    %327 = vector.extract_strided_slice %315 {offsets = [0, 32], sizes = [8, 32], strides = [1, 1]} : vector<8x96xf32> to vector<8x32xf32>
    %328 = vector.extract_strided_slice %318 {offsets = [0, 32], sizes = [8, 32], strides = [1, 1]} : vector<8x96xf32> to vector<8x32xf32>
    %329 = arith.addf %327, %328 : vector<8x32xf32>
    %330 = arith.negf %329 : vector<8x32xf32>
    %331 = math.exp %330 : vector<8x32xf32>
    %cst_67 = arith.constant 1.000000e+00 : f32
    %332 = vector.broadcast %cst_67 : f32 to vector<8x32xf32>
    %333 = arith.addf %332, %331 : vector<8x32xf32>
    %334 = arith.divf %332, %333 : vector<8x32xf32>
    %335 = vector.extract_strided_slice %315 {offsets = [0, 64], sizes = [8, 32], strides = [1, 1]} : vector<8x96xf32> to vector<8x32xf32>
    %336 = vector.extract_strided_slice %318 {offsets = [0, 64], sizes = [8, 32], strides = [1, 1]} : vector<8x96xf32> to vector<8x32xf32>
    %337 = arith.mulf %326, %336 : vector<8x32xf32>
    %338 = arith.addf %335, %337 : vector<8x32xf32>
    %339 = math.tanh %338 : vector<8x32xf32>
    %cst_68 = arith.constant 1.000000e+00 : f32
    %340 = vector.broadcast %cst_68 : f32 to vector<8x32xf32>
    %341 = arith.subf %340, %334 : vector<8x32xf32>
    %342 = arith.mulf %341, %339 : vector<8x32xf32>
    %343 = arith.mulf %334, %306 : vector<8x32xf32>
    %344 = arith.addf %342, %343 : vector<8x32xf32>
    %345 = vector.broadcast %c7_i32 : i32 to vector<8x1xi32>
    %346 = arith.cmpi slt, %345, %7 : vector<8x1xi32>
    %347 = vector.shape_cast %346 : vector<8x1xi1> to vector<8x1xi1>
    %348 = vector.broadcast %347 : vector<8x1xi1> to vector<8x32xi1>
    %349 = arith.select %348, %344, %306 : vector<8x32xi1>, vector<8x32xf32>
    %cst_69 = arith.constant 0.000000e+00 : f32
    %350 = vector.shape_cast %346 : vector<8x1xi1> to vector<8x1xi1>
    %351 = vector.broadcast %350 : vector<8x1xi1> to vector<8x32xi1>
    %352 = vector.broadcast %cst_69 : f32 to vector<8x32xf32>
    %353 = arith.select %351, %344, %352 : vector<8x32xi1>, vector<8x32xf32>
    %354 = arith.addf %311, %353 : vector<8x32xf32>
    %355 = arith.maximumf %312, %353 : vector<8x32xf32>
    %c8_i32_70 = arith.constant 8 : i32
    %cst_71 = arith.constant 1.250000e-01 : f32
    %356 = vector.broadcast %cst_71 : f32 to vector<8x32xf32>
    %357 = arith.mulf %354, %356 : vector<8x32xf32>
    %c0_72 = arith.constant 0 : index
    %c0_73 = arith.constant 0 : index
    %c0_74 = arith.constant 0 : index
    %358 = vector.load %arg7[%c0_72, %c0_73, %c0_74] : memref<3x32x64xf32, #tpu.memory_space<vmem>>, vector<1x32x64xf32>
    %359 = vector.shape_cast %358 : vector<1x32x64xf32> to vector<32x64xf32>
    %cst_75 = arith.constant dense<0.000000e+00> : vector<8x64xf32>
    %360 = tpu.matmul %349, %359, %cst_75 {dimension_numbers = #tpu.dot_dimension_numbers<[1], [0], [0], [1], [0, 0, 1, 1], [], []>} : vector<8x32xf32>, vector<32x64xf32>, vector<8x64xf32> -> vector<8x64xf32>
    %c1 = arith.constant 1 : index
    %c0_76 = arith.constant 0 : index
    %c0_77 = arith.constant 0 : index
    %361 = vector.load %arg7[%c1, %c0_76, %c0_77] : memref<3x32x64xf32, #tpu.memory_space<vmem>>, vector<1x32x64xf32>
    %362 = vector.shape_cast %361 : vector<1x32x64xf32> to vector<32x64xf32>
    %cst_78 = arith.constant dense<0.000000e+00> : vector<8x64xf32>
    %363 = tpu.matmul %357, %362, %cst_78 {dimension_numbers = #tpu.dot_dimension_numbers<[1], [0], [0], [1], [0, 0, 1, 1], [], []>} : vector<8x32xf32>, vector<32x64xf32>, vector<8x64xf32> -> vector<8x64xf32>
    %364 = arith.addf %360, %363 : vector<8x64xf32>
    %c2 = arith.constant 2 : index
    %c0_79 = arith.constant 0 : index
    %c0_80 = arith.constant 0 : index
    %365 = vector.load %arg7[%c2, %c0_79, %c0_80] : memref<3x32x64xf32, #tpu.memory_space<vmem>>, vector<1x32x64xf32>
    %366 = vector.shape_cast %365 : vector<1x32x64xf32> to vector<32x64xf32>
    %cst_81 = arith.constant dense<0.000000e+00> : vector<8x64xf32>
    %367 = tpu.matmul %355, %366, %cst_81 {dimension_numbers = #tpu.dot_dimension_numbers<[1], [0], [0], [1], [0, 0, 1, 1], [], []>} : vector<8x32xf32>, vector<32x64xf32>, vector<8x64xf32> -> vector<8x64xf32>
    %368 = arith.addf %364, %367 : vector<8x64xf32>
    %c0_82 = arith.constant 0 : index
    %c0_83 = arith.constant 0 : index
    %369 = vector.load %arg8[%c0_82, %c0_83] : memref<1x64xf32, #tpu.memory_space<vmem>>, vector<1x64xf32>
    %370 = vector.broadcast %369 : vector<1x64xf32> to vector<8x64xf32>
    %371 = arith.addf %368, %370 : vector<8x64xf32>
    %372 = math.tanh %371 : vector<8x64xf32>
    %cst_84 = arith.constant dense<0.000000e+00> : vector<64xf32>
    %373 = vector.multi_reduction <add>, %372, %cst_84 [0] : vector<8x64xf32> to vector<64xf32>
    %374 = vector.shape_cast %373 : vector<64xf32> to vector<1x64xf32>
    %cst_85 = arith.constant 8.000000e+00 : f32
    %375 = vector.broadcast %cst_85 : f32 to vector<1x64xf32>
    %376 = arith.divf %374, %375 : vector<1x64xf32>
    %377 = vector.broadcast %376 : vector<1x64xf32> to vector<8x64xf32>
    %378 = arith.subf %372, %377 : vector<8x64xf32>
    %379 = arith.mulf %378, %378 : vector<8x64xf32>
    %cst_86 = arith.constant dense<0.000000e+00> : vector<64xf32>
    %380 = vector.multi_reduction <add>, %379, %cst_86 [0] : vector<8x64xf32> to vector<64xf32>
    %381 = vector.shape_cast %380 : vector<64xf32> to vector<1x64xf32>
    %cst_87 = arith.constant 8.000000e+00 : f32
    %382 = vector.broadcast %cst_87 : f32 to vector<1x64xf32>
    %383 = arith.divf %381, %382 : vector<1x64xf32>
    %384 = vector.broadcast %376 : vector<1x64xf32> to vector<8x64xf32>
    %385 = arith.subf %372, %384 : vector<8x64xf32>
    %cst_88 = arith.constant 9.99999974E-6 : f32
    %386 = vector.broadcast %cst_88 : f32 to vector<1x64xf32>
    %387 = arith.addf %383, %386 : vector<1x64xf32>
    %388 = math.rsqrt %387 : vector<1x64xf32>
    %389 = vector.broadcast %388 : vector<1x64xf32> to vector<8x64xf32>
    %390 = arith.mulf %385, %389 : vector<8x64xf32>
    %c0_89 = arith.constant 0 : index
    %c0_90 = arith.constant 0 : index
    %391 = vector.load %arg9[%c0_89, %c0_90] : memref<1x64xf32, #tpu.memory_space<vmem>>, vector<1x64xf32>
    %392 = vector.broadcast %391 : vector<1x64xf32> to vector<8x64xf32>
    %393 = arith.mulf %390, %392 : vector<8x64xf32>
    %c0_91 = arith.constant 0 : index
    %c0_92 = arith.constant 0 : index
    %394 = vector.load %arg10[%c0_91, %c0_92] : memref<1x64xf32, #tpu.memory_space<vmem>>, vector<1x64xf32>
    %395 = vector.broadcast %394 : vector<1x64xf32> to vector<8x64xf32>
    %396 = arith.addf %393, %395 : vector<8x64xf32>
    %c0_93 = arith.constant 0 : index
    %c0_94 = arith.constant 0 : index
    %397 = vector.load %arg11[%c0_93, %c0_94] : memref<64x8xf32, #tpu.memory_space<vmem>>, vector<64x8xf32>
    %cst_95 = arith.constant dense<0.000000e+00> : vector<8x8xf32>
    %398 = tpu.matmul %396, %397, %cst_95 {dimension_numbers = #tpu.dot_dimension_numbers<[1], [0], [0], [1], [0, 0, 1, 1], [], []>} : vector<8x64xf32>, vector<64x8xf32>, vector<8x8xf32> -> vector<8x8xf32>
    %c0_96 = arith.constant 0 : index
    %c0_97 = arith.constant 0 : index
    %399 = vector.load %arg12[%c0_96, %c0_97] : memref<1x8xf32, #tpu.memory_space<vmem>>, vector<1x8xf32>
    %400 = vector.broadcast %399 : vector<1x8xf32> to vector<8x8xf32>
    %401 = arith.addf %398, %400 : vector<8x8xf32>
    %cst_98 = arith.constant dense<0xFF800000> : vector<8xf32>
    %402 = vector.multi_reduction <maximumf>, %401, %cst_98 [1] : vector<8x8xf32> to vector<8xf32>
    %403 = vector.shape_cast %402 : vector<8xf32> to vector<8x1xf32>
    %404 = vector.broadcast %403 : vector<8x1xf32> to vector<8x8xf32>
    %405 = arith.subf %401, %404 : vector<8x8xf32>
    %406 = math.exp %405 : vector<8x8xf32>
    %cst_99 = arith.constant dense<0.000000e+00> : vector<8xf32>
    %407 = vector.multi_reduction <add>, %406, %cst_99 [1] : vector<8x8xf32> to vector<8xf32>
    %408 = vector.shape_cast %407 : vector<8xf32> to vector<8x1xf32>
    %409 = math.log %408 : vector<8x1xf32>
    %410 = arith.addf %403, %409 : vector<8x1xf32>
    %411 = vector.broadcast %410 : vector<8x1xf32> to vector<8x8xf32>
    %412 = arith.subf %401, %411 : vector<8x8xf32>
    %c0_100 = arith.constant 0 : index
    %c0_101 = arith.constant 0 : index
    %413 = vector.load %arg13[%c0_100, %c0_101] : memref<8x8xf32, #tpu.memory_space<vmem>>, vector<8x8xf32>
    tpu.vector_store %arg13[%c0_100, %c0_101], %412 {strides = array<i32>} : memref<8x8xf32, #tpu.memory_space<vmem>>, vector<8x8xf32>,
    return
  }
  func.func @transform_0(%arg0: i32) -> (i32, i32) {
    %c0_i32 = arith.constant 0 : i32
    %c0_i32_0 = arith.constant 0 : i32
    %c0_i32_1 = arith.constant 0 : i32
    return %c0_i32, %c0_i32_0 : i32, i32
  }
  func.func @transform_1(%arg0: i32) -> (i32, i32) {
    %c0_i32 = arith.constant 0 : i32
    %c0_i32_0 = arith.constant 0 : i32
    %c0_i32_1 = arith.constant 0 : i32
    return %c0_i32, %c0_i32_0 : i32, i32
  }
  func.func @transform_2(%arg0: i32) -> (i32, i32) {
    %c0_i32 = arith.constant 0 : i32
    %c0_i32_0 = arith.constant 0 : i32
    %c0_i32_1 = arith.constant 0 : i32
    return %c0_i32, %c0_i32_0 : i32, i32
  }
  func.func @transform_3(%arg0: i32) -> (i32, i32) {
    %c0_i32 = arith.constant 0 : i32
    %c0_i32_0 = arith.constant 0 : i32
    %c0_i32_1 = arith.constant 0 : i32
    return %c0_i32, %c0_i32_0 : i32, i32
  }
  func.func @transform_4(%arg0: i32) -> (i32, i32) {
    %c0_i32 = arith.constant 0 : i32
    %c0_i32_0 = arith.constant 0 : i32
    %c0_i32_1 = arith.constant 0 : i32
    return %c0_i32, %c0_i32_0 : i32, i32
  }
  func.func @transform_5(%arg0: i32) -> (i32, i32) {
    %c0_i32 = arith.constant 0 : i32
    %c0_i32_0 = arith.constant 0 : i32
    %c0_i32_1 = arith.constant 0 : i32
    return %c0_i32, %c0_i32_0 : i32, i32
  }
  func.func @transform_6(%arg0: i32) -> (i32, i32, i32) {
    %c0_i32 = arith.constant 0 : i32
    %c0_i32_0 = arith.constant 0 : i32
    %c0_i32_1 = arith.constant 0 : i32
    %c0_i32_2 = arith.constant 0 : i32
    return %c0_i32, %c0_i32_0, %c0_i32_1 : i32, i32, i32
  }
  func.func @transform_7(%arg0: i32) -> (i32, i32) {
    %c0_i32 = arith.constant 0 : i32
    %c0_i32_0 = arith.constant 0 : i32
    %c0_i32_1 = arith.constant 0 : i32
    return %c0_i32, %c0_i32_0 : i32, i32
  }
  func.func @transform_8(%arg0: i32) -> (i32, i32) {
    %c0_i32 = arith.constant 0 : i32
    %c0_i32_0 = arith.constant 0 : i32
    %c0_i32_1 = arith.constant 0 : i32
    return %c0_i32, %c0_i32_0 : i32, i32
  }
  func.func @transform_9(%arg0: i32) -> (i32, i32) {
    %c0_i32 = arith.constant 0 : i32
    %c0_i32_0 = arith.constant 0 : i32
    %c0_i32_1 = arith.constant 0 : i32
    return %c0_i32, %c0_i32_0 : i32, i32
  }
  func.func @transform_10(%arg0: i32) -> (i32, i32) {
    %c0_i32 = arith.constant 0 : i32
    %c0_i32_0 = arith.constant 0 : i32
    %c0_i32_1 = arith.constant 0 : i32
    return %c0_i32, %c0_i32_0 : i32, i32
  }
  func.func @transform_11(%arg0: i32) -> (i32, i32) {
    %c0_i32 = arith.constant 0 : i32
    %c0_i32_0 = arith.constant 0 : i32
    %c0_i32_1 = arith.constant 0 : i32
    return %c0_i32, %c0_i32_0 : i32, i32
  }
  func.func @transform_12(%arg0: i32) -> (i32, i32) {
    %c0_i32 = arith.constant 0 : i32
    %c0_i32_0 = arith.constant 0 : i32
    %c0_i32_1 = arith.constant 0 : i32
    return %c0_i32, %c0_i32_0 : i32, i32
  }
}

</mosaic_0001>

<llo_original>
// kernel: tpu_custom_call.1
$region0: #{tpu_custom_call.1}
  #allocation0 [shape = 'u32[]', space=smem, size = 0x4, offset = 0x4, fixed_abs, tag = 'smem constant byte address 0x4 - core index']
  #allocation1 [shape = 'u32[144,128]{1,0:T(1,128)}', space=vmem, size = 0x12000, scoped, tag = 'internal scratch']
  #allocation2 [shape = 'f32[64,96]{1,0:T(8,128)}', space=vmem, size = 0x8000, scoped, tag = 'scratch operand']
  %s0 = inlined_call_operand.vmem [shape: f32[64,32], index: 0, kind: input, shape index: {}]
  %s1 = inlined_call_operand.vmem [shape: s32[8,1], index: 1, kind: input, shape index: {}]
  %s2 = inlined_call_operand.vmem [shape: f32[32,96], index: 2, kind: input, shape index: {}]
  %s3 = inlined_call_operand.vmem [shape: f32[1,96], index: 3, kind: input, shape index: {}]
  %s4 = inlined_call_operand.vmem [shape: f32[32,96], index: 4, kind: input, shape index: {}]
  %s5 = inlined_call_operand.vmem [shape: f32[1,96], index: 5, kind: input, shape index: {}]
  %s6 = inlined_call_operand.vmem [shape: f32[3,32,64], index: 6, kind: input, shape index: {}]
  %s7 = inlined_call_operand.vmem [shape: f32[1,64], index: 7, kind: input, shape index: {}]
  %s8 = inlined_call_operand.vmem [shape: f32[1,64], index: 8, kind: input, shape index: {}]
  %s9 = inlined_call_operand.vmem [shape: f32[1,64], index: 9, kind: input, shape index: {}]
  %s10 = inlined_call_operand.vmem [shape: f32[64,8], index: 10, kind: input, shape index: {}]
  %s11 = inlined_call_operand.vmem [shape: f32[1,8], index: 11, kind: input, shape index: {}]
  %s12 = inlined_call_operand.hbm [shape: f32[8,8], index: 12, kind: output, shape index: {}]
  %s13 = sld [smem:[#allocation0]]
  $region58: #{tpu_custom_call.1} parent=0
    _
  %s15 = ssub.s32 1, %s13
  %s16 = scalar_select 0, %s15, %s13
  $region1: #{tpu_custom_call.1} parent=0
    #allocation3 [shape = 'u8[4096]{0}', space=vmem, size = 0x1000, scoped, tag = 'output window, operand 0, single buffered']
    #allocation4 [shape = 's32[1]{0}', space=sflag, size = 0x4, scoped, tag = 'scoped memory for tpu_custom_call.1']
    %17 = vsyncpa [#allocation4], 0
    // Predicated region
    $region2: #{tpu_custom_call.1} parent=1 // pred_check
      _
    $region3: #{tpu_custom_call.1} parent=1 // pred_check_branch
      %19 = sbr.rel (0) target = $region5
    $region4: #{tpu_custom_call.1} parent=1 // pred_region
      _
    $region5: #{tpu_custom_call.1} parent=1 // pred_fallthru
      _
    // Predicated region
    $region6: #{tpu_custom_call.1} parent=1 // pred_check
      _
    $region7: #{tpu_custom_call.1} parent=1 // pred_check_branch
      %21 = sbr.rel (0) target = $region9
    $region8: #{tpu_custom_call.1} parent=1 // pred_region
      _
    $region9: #{tpu_custom_call.1} parent=1 // pred_fallthru
      _
    // Predicated region
    $region10: #{tpu_custom_call.1} parent=1 // pred_check
      _
    $region11: #{tpu_custom_call.1} parent=1 // pred_check_branch
      %23 = sbr.rel (0) target = $region13
    $region12: #{tpu_custom_call.1} parent=1 // pred_region
      _
    $region13: #{tpu_custom_call.1} parent=1 // pred_fallthru
      _
    // Predicated region
    $region14: #{tpu_custom_call.1} parent=1 // pred_check
      _
    $region15: #{tpu_custom_call.1} parent=1 // pred_check_branch
      %25 = sbr.rel (0) target = $region17
    $region16: #{tpu_custom_call.1} parent=1 // pred_region
      _
    $region17: #{tpu_custom_call.1} parent=1 // pred_fallthru
      _
    // Predicated region
    $region18: #{tpu_custom_call.1} parent=1 // pred_check
      _
    $region19: #{tpu_custom_call.1} parent=1 // pred_check_branch
      %27 = sbr.rel (0) target = $region21
    $region20: #{tpu_custom_call.1} parent=1 // pred_region
      _
    $region21: #{tpu_custom_call.1} parent=1 // pred_fallthru
      _
    // Predicated region
    $region22: #{tpu_custom_call.1} parent=1 // pred_check
      _
    $region23: #{tpu_custom_call.1} parent=1 // pred_check_branch
      %29 = sbr.rel (0) target = $region25
    $region24: #{tpu_custom_call.1} parent=1 // pred_region
      _
    $region25: #{tpu_custom_call.1} parent=1 // pred_fallthru
      _
    // Predicated region
    $region26: #{tpu_custom_call.1} parent=1 // pred_check
      _
    $region27: #{tpu_custom_call.1} parent=1 // pred_check_branch
      %31 = sbr.rel (0) target = $region29
    $region28: #{tpu_custom_call.1} parent=1 // pred_region
      _
    $region29: #{tpu_custom_call.1} parent=1 // pred_fallthru
      _
    // Predicated region
    $region30: #{tpu_custom_call.1} parent=1 // pred_check
      _
    $region31: #{tpu_custom_call.1} parent=1 // pred_check_branch
      %33 = sbr.rel (0) target = $region33
    $region32: #{tpu_custom_call.1} parent=1 // pred_region
      _
    $region33: #{tpu_custom_call.1} parent=1 // pred_fallthru
      _
    // Predicated region
    $region34: #{tpu_custom_call.1} parent=1 // pred_check
      _
    $region35: #{tpu_custom_call.1} parent=1 // pred_check_branch
      %35 = sbr.rel (0) target = $region37
    $region36: #{tpu_custom_call.1} parent=1 // pred_region
      _
    $region37: #{tpu_custom_call.1} parent=1 // pred_fallthru
      _
    // Predicated region
    $region38: #{tpu_custom_call.1} parent=1 // pred_check
      _
    $region39: #{tpu_custom_call.1} parent=1 // pred_check_branch
      %37 = sbr.rel (0) target = $region41
    $region40: #{tpu_custom_call.1} parent=1 // pred_region
      _
    $region41: #{tpu_custom_call.1} parent=1 // pred_fallthru
      _
    // Predicated region
    $region42: #{tpu_custom_call.1} parent=1 // pred_check
      _
    $region43: #{tpu_custom_call.1} parent=1 // pred_check_branch
      %39 = sbr.rel (0) target = $region45
    $region44: #{tpu_custom_call.1} parent=1 // pred_region
      _
    $region45: #{tpu_custom_call.1} parent=1 // pred_fallthru
      _
    // Predicated region
    $region46: #{tpu_custom_call.1} parent=1 // pred_check
      _
    $region47: #{tpu_custom_call.1} parent=1 // pred_check_branch
      %41 = sbr.rel (0) target = $region49
    $region48: #{tpu_custom_call.1} parent=1 // pred_region
      _
    $region49: #{tpu_custom_call.1} parent=1 // pred_fallthru
      _
    %v42 = vld [vmem:[%s0] sm:$0xff]
    %v43 = vld [vmem:[%s0 + $0x8] sm:$0xff]
    %v44 = vld [vmem:[%s0 + $0x10] sm:$0xff]
    %v45 = vld [vmem:[%s0 + $0x18] sm:$0xff]
    %v46 = vld [vmem:[%s0 + $0x20] sm:$0xff]
    %v47 = vld [vmem:[%s0 + $0x28] sm:$0xff]
    %v48 = vld [vmem:[%s0 + $0x30] sm:$0xff]
    %v49 = vld [vmem:[%s0 + $0x38] sm:$0xff]
    %v50 = vld [vmem:[%s2] sm:$0xff]
    %v51 = vld [vmem:[%s2 + $0x8] sm:$0xff]
    %v52 = vld [vmem:[%s2 + $0x10] sm:$0xff]
    %v53 = vld [vmem:[%s2 + $0x18] sm:$0xff]
    %v54 = vld [vmem:[%s3] sm:$0x1]
    %v56 = vlaneseq
    %v57 = vshrl.u32 %v56, 7
    %v58 = vsub.s32 0, %v57
    %v59 = vrot.slane %v54, %v58
    %vm61 = vcmask 261120
    %v63 = vsel %vm61, %v42, 0
    %v66 = vsel %vm61, %v43, 0
    %v69 = vsel %vm61, %v44, 0
    %v72 = vsel %vm61, %v45, 0
    %v75 = vsel %vm61, %v46, 0
    %v78 = vsel %vm61, %v47, 0
    %v81 = vsel %vm61, %v48, 0
    %v84 = vsel %vm61, %v49, 0
    %86 = vmatprep.subr.mxu0 0.0
    %87 = vmatpush1.msra.mxu0 %v50
    %88 = vmatprep.subr.mxu0 0.0
    %89 = vmatpush1.msra.mxu0 %v51
    %90 = vmatprep.subr.mxu0 0.0
    %91 = vmatpush1.msra.mxu0 %v52
    %92 = vmatprep.subr.mxu0 0.0
    %93 = vmatpush1.msra.mxu0 %v53
    %94 = vmatprep.subr.mxu0 0.0
    %95 = vmatpush1.msra.mxu0 0.0
    %96 = vmatprep.subr.mxu0 0.0
    %97 = vmatpush1.msra.mxu0 0.0
    %98 = vmatprep.subr.mxu0 0.0
    %99 = vmatpush1.msra.mxu0 0.0
    %100 = vmatprep.subr.mxu0 0.0
    %101 = vmatpush1.msra.mxu0 0.0
    %102 = vmatprep.subr.mxu0 0.0
    %103 = vmatpush1.msra.mxu0 0.0
    %104 = vmatprep.subr.mxu0 0.0
    %105 = vmatpush1.msra.mxu0 0.0
    %106 = vmatprep.subr.mxu0 0.0
    %107 = vmatpush1.msra.mxu0 0.0
    %108 = vmatprep.subr.mxu0 0.0
    %109 = vmatpush1.msra.mxu0 0.0
    %110 = vmatprep.subr.mxu0 0.0
    %111 = vmatpush1.msra.mxu0 0.0
    %112 = vmatprep.subr.mxu0 0.0
    %113 = vmatpush1.msra.mxu0 0.0
    %114 = vmatprep.subr.mxu0 0.0
    %115 = vmatpush1.msra.mxu0 0.0
    %116 = vmatprep.subr.mxu0 0.0
    %117 = vmatpush1.msra.mxu0 0.0
    %118 = vmatprep.subr.mxu0 0.0
    %119 = vmatpush1.msra.mxu0 0.0
    %120 = vmatprep.subr.mxu0 0.0
    %121 = vmatpush1.msra.mxu0 0.0
    %122 = vmatprep.subr.mxu0 0.0
    %123 = vmatpush1.msra.mxu0 0.0
    %124 = vmatprep.subr.mxu0 0.0
    %125 = vmatpush1.msra.mxu0 0.0
    %126 = vmatprep.subr.mxu0 0.0
    %127 = vmatpush1.msra.mxu0 0.0
    %128 = vmatprep.subr.mxu0 0.0
    %129 = vmatpush1.msra.mxu0 0.0
    %130 = vmatprep.subr.mxu0 0.0
    %131 = vmatpush1.msra.mxu0 0.0
    %132 = vmatprep.subr.mxu0 0.0
    %133 = vmatpush1.msra.mxu0 0.0
    %134 = vmatprep.subr.mxu0 0.0
    %135 = vmatpush1.msra.mxu0 0.0
    %136 = vmatprep.subr.mxu0 0.0
    %137 = vmatpush1.msra.mxu0 0.0
    %138 = vmatprep.subr.mxu0 0.0
    %139 = vmatpush1.msra.mxu0 0.0
    %140 = vmatprep.subr.mxu0 0.0
    %141 = vmatpush1.msra.mxu0 0.0
    %142 = vmatprep.subr.mxu0 0.0
    %143 = vmatpush1.msra.mxu0 0.0
    %144 = vmatprep.subr.mxu0 0.0
    %145 = vmatpush1.msra.mxu0 0.0
    %146 = vmatprep.subr.mxu0 0.0
    %147 = vmatpush1.msra.mxu0 0.0
    %148 = vmatprep.subr.mxu0 0.0
    %149 = vmatpush1.msra.mxu0 0.0
    %150 = vmatprep.mubr.f32.mxu0 0.0
    %151 = vmatmul.mubr.f32.gmra.mrb[0].mxu0 %v63
    %v152 = vpop.f32.mrb[0].mxu0
    %v153 = vadd.f32 %v59, %v152
    %v154 = vpop.f32.mrb[0].mxu0
    %155 = vmatprep.mubr.f32.mxu0 0.0
    %156 = vmatmul.mubr.f32.gmra.mrb[0].mxu0 %v66
    %v157 = vpop.f32.mrb[0].mxu0
    %v158 = vadd.f32 %v59, %v157
    %v159 = vpop.f32.mrb[0].mxu0
    %160 = vmatprep.mubr.f32.mxu0 0.0
    %161 = vmatmul.mubr.f32.gmra.mrb[0].mxu0 %v69
    %v162 = vpop.f32.mrb[0].mxu0
    %v163 = vadd.f32 %v59, %v162
    %v164 = vpop.f32.mrb[0].mxu0
    %165 = vmatprep.mubr.f32.mxu0 0.0
    %166 = vmatmul.mubr.f32.gmra.mrb[0].mxu0 %v72
    %v167 = vpop.f32.mrb[0].mxu0
    %v168 = vadd.f32 %v59, %v167
    %v169 = vpop.f32.mrb[0].mxu0
    %170 = vmatprep.mubr.f32.mxu0 0.0
    %171 = vmatmul.mubr.f32.gmra.mrb[0].mxu0 %v75
    %v172 = vpop.f32.mrb[0].mxu0
    %v173 = vadd.f32 %v59, %v172
    %v174 = vpop.f32.mrb[0].mxu0
    %175 = vmatprep.mubr.f32.mxu0 0.0
    %176 = vmatmul.mubr.f32.gmra.mrb[0].mxu0 %v78
    %v177 = vpop.f32.mrb[0].mxu0
    %v178 = vadd.f32 %v59, %v177
    %v179 = vpop.f32.mrb[0].mxu0
    %180 = vmatprep.mubr.f32.mxu0 0.0
    %181 = vmatmul.mubr.f32.gmra.mrb[0].mxu0 %v81
    %v182 = vpop.f32.mrb[0].mxu0
    %v183 = vadd.f32 %v59, %v182
    %v184 = vpop.f32.mrb[0].mxu0
    %185 = vmatprep.mubr.f32.mxu0 0.0
    %186 = vmatmul.mubr.f32.gmra.mrb[0].mxu0 %v84
    %v187 = vpop.f32.mrb[0].mxu0
    %v188 = vadd.f32 %v59, %v187
    %v189 = vpop.f32.mrb[0].mxu0
    %190 = vdwg.mxu0
    %vm191 = vcmask 785408
    %192 = vst.msk [vmem:[#allocation2] sm:$0xff] %vm191, %v153
    %193 = vst.msk [vmem:[#allocation2 + $0x8] sm:$0xff] %vm191, %v158
    %194 = vst.msk [vmem:[#allocation2 + $0x10] sm:$0xff] %vm191, %v163
    %195 = vst.msk [vmem:[#allocation2 + $0x18] sm:$0xff] %vm191, %v168
    %196 = vst.msk [vmem:[#allocation2 + $0x20] sm:$0xff] %vm191, %v173
    %197 = vst.msk [vmem:[#allocation2 + $0x28] sm:$0xff] %vm191, %v178
    %198 = vst.msk [vmem:[#allocation2 + $0x30] sm:$0xff] %vm191, %v183
    %199 = vst.msk [vmem:[#allocation2 + $0x38] sm:$0xff] %vm191, %v188
    %v200 = vld [vmem:[%s1] sm:$0xff]
    %v201 = vld [vmem:[%s4] sm:$0xff]
    %v202 = vld [vmem:[%s4 + $0x8] sm:$0xff]
    %v203 = vld [vmem:[%s4 + $0x10] sm:$0xff]
    %v204 = vld [vmem:[%s4 + $0x18] sm:$0xff]
    %v205 = vld [vmem:[%s5] sm:$0x1]
    %v206 = vld [vmem:[#allocation2] sm:$0xff]
    %v208 = vlaneseq
    %v209 = vshrl.u32 %v208, 7
    %v210 = vsub.s32 0, %v209
    %v211 = vrot.slane %v205, %v210
    %v214 = vsel %vm61, 0.0, 0
    %216 = vmatprep.subr.mxu0 0.0
    %217 = vmatpush1.msra.mxu0 %v201
    %218 = vmatprep.subr.mxu0 0.0
    %219 = vmatpush1.msra.mxu0 %v202
    %220 = vmatprep.subr.mxu0 0.0
    %221 = vmatpush1.msra.mxu0 %v203
    %222 = vmatprep.subr.mxu0 0.0
    %223 = vmatpush1.msra.mxu0 %v204
    %224 = vmatprep.subr.mxu0 0.0
    %225 = vmatpush1.msra.mxu0 0.0
    %226 = vmatprep.subr.mxu0 0.0
    %227 = vmatpush1.msra.mxu0 0.0
    %228 = vmatprep.subr.mxu0 0.0
    %229 = vmatpush1.msra.mxu0 0.0
    %230 = vmatprep.subr.mxu0 0.0
    %231 = vmatpush1.msra.mxu0 0.0
    %232 = vmatprep.subr.mxu0 0.0
    %233 = vmatpush1.msra.mxu0 0.0
    %234 = vmatprep.subr.mxu0 0.0
    %235 = vmatpush1.msra.mxu0 0.0
    %236 = vmatprep.subr.mxu0 0.0
    %237 = vmatpush1.msra.mxu0 0.0
    %238 = vmatprep.subr.mxu0 0.0
    %239 = vmatpush1.msra.mxu0 0.0
    %240 = vmatprep.subr.mxu0 0.0
    %241 = vmatpush1.msra.mxu0 0.0
    %242 = vmatprep.subr.mxu0 0.0
    %243 = vmatpush1.msra.mxu0 0.0
    %244 = vmatprep.subr.mxu0 0.0
    %245 = vmatpush1.msra.mxu0 0.0
    %246 = vmatprep.subr.mxu0 0.0
    %247 = vmatpush1.msra.mxu0 0.0
    %248 = vmatprep.subr.mxu0 0.0
    %249 = vmatpush1.msra.mxu0 0.0
    %250 = vmatprep.subr.mxu0 0.0
    %251 = vmatpush1.msra.mxu0 0.0
    %252 = vmatprep.subr.mxu0 0.0
    %253 = vmatpush1.msra.mxu0 0.0
    %254 = vmatprep.subr.mxu0 0.0
    %255 = vmatpush1.msra.mxu0 0.0
    %256 = vmatprep.subr.mxu0 0.0
    %257 = vmatpush1.msra.mxu0 0.0
    %258 = vmatprep.subr.mxu0 0.0
    %259 = vmatpush1.msra.mxu0 0.0
    %260 = vmatprep.subr.mxu0 0.0
    %261 = vmatpush1.msra.mxu0 0.0
    %262 = vmatprep.subr.mxu0 0.0
    %263 = vmatpush1.msra.mxu0 0.0
    %264 = vmatprep.subr.mxu0 0.0
    %265 = vmatpush1.msra.mxu0 0.0
    %266 = vmatprep.subr.mxu0 0.0
    %267 = vmatpush1.msra.mxu0 0.0
    %268 = vmatprep.subr.mxu0 0.0
    %269 = vmatpush1.msra.mxu0 0.0
    %270 = vmatprep.subr.mxu0 0.0
    %271 = vmatpush1.msra.mxu0 0.0
    %272 = vmatprep.subr.mxu0 0.0
    %273 = vmatpush1.msra.mxu0 0.0
    %274 = vmatprep.subr.mxu0 0.0
    %275 = vmatpush1.msra.mxu0 0.0
    %276 = vmatprep.subr.mxu0 0.0
    %277 = vmatpush1.msra.mxu0 0.0
    %278 = vmatprep.subr.mxu0 0.0
    %279 = vmatpush1.msra.mxu0 0.0
    %280 = vmatprep.mubr.f32.mxu0 0.0
    %281 = vmatmul.mubr.f32.gmra.mrb[0].mxu0 %v214
    %v282 = vpop.f32.mrb[0].mxu0
    %v283 = vadd.f32 %v211, %v282
    %v284 = vpop.f32.mrb[0].mxu0
    %285 = vdwg.mxu0
    %v286 = vadd.f32 %v206, %v283
    %v287 = vxor.u32 %v286, 2147483648
    %v288 = vmul.f32 %v287, 1.442695
    %v289 = vpow.pop %v288
    %v290 = vadd.f32 %v289, 1.0
    %v291 = vrcp.pop %v290
    %v292 = vmul.f32 1.0, %v291
    %294 = vrot.lane.b32.xlu0 %v283, 64
    %v295 = vpop.permute.xlu0 %294
    %v297 = vmul.f32 %v292, %v295
    %299 = vrot.lane.b32.xlu0 %v297, 64
    %v300 = vpop.permute.xlu0 %299
    %v302 = vadd.f32 %v206, %v300
    %v303 = vtanh.pop %v302
    %v304 = vsub.f32 1.0, %v292
    %306 = vrot.lane.b32.xlu0 %v303, 96
    %v307 = vpop.permute.xlu0 %306
    %v309 = vmul.f32 %v304, %v307
    %v310 = vmul.f32 %v292, 0.0
    %v311 = vadd.f32 %v309, %v310
    %vm312 = vcmp.gt.s32.totalorder %v200, 0
    %v313 = vsel %vm312, 1, 0
    %314 = vset.pattern.permute.xlu0 0
    %315 = vperm.xlu0 %314, %v313
    %v316 = vpop.permute.xlu0 %315
    %vm317 = vcmp.eq.s32.totalorder %v316, 1
    %v318 = vsel %vm317, %v311, 0.0
    %v319 = vadd.f32 %v318, 0.0
    %v320 = vld [vmem:[#allocation2 + $0x8] sm:$0xff]
    %322 = vrot.lane.b32.xlu0 %v318, 96
    %v323 = vpop.permute.xlu0 %322
    %v324 = vsel %vm61, %v323, 0
    %326 = vmatprep.subr.mxu0 0.0
    %327 = vmatpush1.msra.mxu0 %v201
    %328 = vmatprep.subr.mxu0 0.0
    %329 = vmatpush1.msra.mxu0 %v202
    %330 = vmatprep.subr.mxu0 0.0
    %331 = vmatpush1.msra.mxu0 %v203
    %332 = vmatprep.subr.mxu0 0.0
    %333 = vmatpush1.msra.mxu0 %v204
    %334 = vmatprep.subr.mxu0 0.0
    %335 = vmatpush1.msra.mxu0 0.0
    %336 = vmatprep.subr.mxu0 0.0
    %337 = vmatpush1.msra.mxu0 0.0
    %338 = vmatprep.subr.mxu0 0.0
    %339 = vmatpush1.msra.mxu0 0.0
    %340 = vmatprep.subr.mxu0 0.0
    %341 = vmatpush1.msra.mxu0 0.0
    %342 = vmatprep.subr.mxu0 0.0
    %343 = vmatpush1.msra.mxu0 0.0
    %344 = vmatprep.subr.mxu0 0.0
    %345 = vmatpush1.msra.mxu0 0.0
    %346 = vmatprep.subr.mxu0 0.0
    %347 = vmatpush1.msra.mxu0 0.0
    %348 = vmatprep.subr.mxu0 0.0
    %349 = vmatpush1.msra.mxu0 0.0
    %350 = vmatprep.subr.mxu0 0.0
    %351 = vmatpush1.msra.mxu0 0.0
    %352 = vmatprep.subr.mxu0 0.0
    %353 = vmatpush1.msra.mxu0 0.0
    %354 = vmatprep.subr.mxu0 0.0
    %355 = vmatpush1.msra.mxu0 0.0
    %356 = vmatprep.subr.mxu0 0.0
    %357 = vmatpush1.msra.mxu0 0.0
    %358 = vmatprep.subr.mxu0 0.0
    %359 = vmatpush1.msra.mxu0 0.0
    %360 = vmatprep.subr.mxu0 0.0
    %361 = vmatpush1.msra.mxu0 0.0
    %362 = vmatprep.subr.mxu0 0.0
    %363 = vmatpush1.msra.mxu0 0.0
    %364 = vmatprep.subr.mxu0 0.0
    %365 = vmatpush1.msra.mxu0 0.0
    %366 = vmatprep.subr.mxu0 0.0
    %367 = vmatpush1.msra.mxu0 0.0
    %368 = vmatprep.subr.mxu0 0.0
    %369 = vmatpush1.msra.mxu0 0.0
    %370 = vmatprep.subr.mxu0 0.0
    %371 = vmatpush1.msra.mxu0 0.0
    %372 = vmatprep.subr.mxu0 0.0
    %373 = vmatpush1.msra.mxu0 0.0
    %374 = vmatprep.subr.mxu0 0.0
    %375 = vmatpush1.msra.mxu0 0.0
    %376 = vmatprep.subr.mxu0 0.0
    %377 = vmatpush1.msra.mxu0 0.0
    %378 = vmatprep.subr.mxu0 0.0
    %379 = vmatpush1.msra.mxu0 0.0
    %380 = vmatprep.subr.mxu0 0.0
    %381 = vmatpush1.msra.mxu0 0.0
    %382 = vmatprep.subr.mxu0 0.0
    %383 = vmatpush1.msra.mxu0 0.0
    %384 = vmatprep.subr.mxu0 0.0
    %385 = vmatpush1.msra.mxu0 0.0
    %386 = vmatprep.subr.mxu0 0.0
    %387 = vmatpush1.msra.mxu0 0.0
    %388 = vmatprep.subr.mxu0 0.0
    %389 = vmatpush1.msra.mxu0 0.0
    %390 = vmatprep.mubr.f32.mxu0 0.0
    %391 = vmatmul.mubr.f32.gmra.mrb[0].mxu0 %v324
    %v392 = vpop.f32.mrb[0].mxu0
    %v393 = vadd.f32 %v211, %v392
    %v394 = vpop.f32.mrb[0].mxu0
    %395 = vdwg.mxu0
    %v396 = vadd.f32 %v320, %v393
    %v397 = vxor.u32 %v396, 2147483648
    %v398 = vmul.f32 %v397, 1.442695
    %v399 = vpow.pop %v398
    %v400 = vadd.f32 %v399, 1.0
    %v401 = vrcp.pop %v400
    %v402 = vmul.f32 1.0, %v401
    %404 = vrot.lane.b32.xlu0 %v393, 64
    %v405 = vpop.permute.xlu0 %404
    %v407 = vmul.f32 %v402, %v405
    %409 = vrot.lane.b32.xlu0 %v407, 64
    %v410 = vpop.permute.xlu0 %409
    %v412 = vadd.f32 %v320, %v410
    %v413 = vtanh.pop %v412
    %v414 = vsub.f32 1.0, %v402
    %416 = vrot.lane.b32.xlu0 %v413, 96
    %v417 = vpop.permute.xlu0 %416
    %v419 = vmul.f32 %v414, %v417
    %v420 = vmul.f32 %v402, %v318
    %v421 = vadd.f32 %v419, %v420
    %vm422 = vcmp.gt.s32.totalorder %v200, 1
    %v423 = vsel %vm422, 1, 0
    %424 = vset.pattern.permute.xlu0 0
    %425 = vperm.xlu0 %424, %v423
    %v426 = vpop.permute.xlu0 %425
    %vm427 = vcmp.eq.s32.totalorder %v426, 1
    %v428 = vsel %vm427, %v421, %v318
    %v429 = vsel %vm427, %v421, 0.0
    %v430 = vadd.f32 %v319, %v429
    %v431 = vmax.f32 %v318, %v429
    %v432 = vld [vmem:[#allocation2 + $0x10] sm:$0xff]
    %434 = vrot.lane.b32.xlu0 %v428, 96
    %v435 = vpop.permute.xlu0 %434
    %v436 = vsel %vm61, %v435, 0
    %438 = vmatprep.subr.mxu0 0.0
    %439 = vmatpush1.msra.mxu0 %v201
    %440 = vmatprep.subr.mxu0 0.0
    %441 = vmatpush1.msra.mxu0 %v202
    %442 = vmatprep.subr.mxu0 0.0
    %443 = vmatpush1.msra.mxu0 %v203
    %444 = vmatprep.subr.mxu0 0.0
    %445 = vmatpush1.msra.mxu0 %v204
    %446 = vmatprep.subr.mxu0 0.0
    %447 = vmatpush1.msra.mxu0 0.0
    %448 = vmatprep.subr.mxu0 0.0
    %449 = vmatpush1.msra.mxu0 0.0
    %450 = vmatprep.subr.mxu0 0.0
    %451 = vmatpush1.msra.mxu0 0.0
    %452 = vmatprep.subr.mxu0 0.0
    %453 = vmatpush1.msra.mxu0 0.0
    %454 = vmatprep.subr.mxu0 0.0
    %455 = vmatpush1.msra.mxu0 0.0
    %456 = vmatprep.subr.mxu0 0.0
    %457 = vmatpush1.msra.mxu0 0.0
    %458 = vmatprep.subr.mxu0 0.0
    %459 = vmatpush1.msra.mxu0 0.0
    %460 = vmatprep.subr.mxu0 0.0
    %461 = vmatpush1.msra.mxu0 0.0
    %462 = vmatprep.subr.mxu0 0.0
    %463 = vmatpush1.msra.mxu0 0.0
    %464 = vmatprep.subr.mxu0 0.0
    %465 = vmatpush1.msra.mxu0 0.0
    %466 = vmatprep.subr.mxu0 0.0
    %467 = vmatpush1.msra.mxu0 0.0
    %468 = vmatprep.subr.mxu0 0.0
    %469 = vmatpush1.msra.mxu0 0.0
    %470 = vmatprep.subr.mxu0 0.0
    %471 = vmatpush1.msra.mxu0 0.0
    %472 = vmatprep.subr.mxu0 0.0
    %473 = vmatpush1.msra.mxu0 0.0
    %474 = vmatprep.subr.mxu0 0.0
    %475 = vmatpush1.msra.mxu0 0.0
    %476 = vmatprep.subr.mxu0 0.0
    %477 = vmatpush1.msra.mxu0 0.0
    %478 = vmatprep.subr.mxu0 0.0
    %479 = vmatpush1.msra.mxu0 0.0
    %480 = vmatprep.subr.mxu0 0.0
    %481 = vmatpush1.msra.mxu0 0.0
    %482 = vmatprep.subr.mxu0 0.0
    %483 = vmatpush1.msra.mxu0 0.0
    %484 = vmatprep.subr.mxu0 0.0
    %485 = vmatpush1.msra.mxu0 0.0
    %486 = vmatprep.subr.mxu0 0.0
    %487 = vmatpush1.msra.mxu0 0.0
    %488 = vmatprep.subr.mxu0 0.0
    %489 = vmatpush1.msra.mxu0 0.0
    %490 = vmatprep.subr.mxu0 0.0
    %491 = vmatpush1.msra.mxu0 0.0
    %492 = vmatprep.subr.mxu0 0.0
    %493 = vmatpush1.msra.mxu0 0.0
    %494 = vmatprep.subr.mxu0 0.0
    %495 = vmatpush1.msra.mxu0 0.0
    %496 = vmatprep.subr.mxu0 0.0
    %497 = vmatpush1.msra.mxu0 0.0
    %498 = vmatprep.subr.mxu0 0.0
    %499 = vmatpush1.msra.mxu0 0.0
    %500 = vmatprep.subr.mxu0 0.0
    %501 = vmatpush1.msra.mxu0 0.0
    %502 = vmatprep.mubr.f32.mxu0 0.0
    %503 = vmatmul.mubr.f32.gmra.mrb[0].mxu0 %v436
    %v504 = vpop.f32.mrb[0].mxu0
    %v505 = vadd.f32 %v211, %v504
    %v506 = vpop.f32.mrb[0].mxu0
    %507 = vdwg.mxu0
    %v508 = vadd.f32 %v432, %v505
    %v509 = vxor.u32 %v508, 2147483648
    %v510 = vmul.f32 %v509, 1.442695
    %v511 = vpow.pop %v510
    %v512 = vadd.f32 %v511, 1.0
    %v513 = vrcp.pop %v512
    %v514 = vmul.f32 1.0, %v513
    %516 = vrot.lane.b32.xlu0 %v505, 64
    %v517 = vpop.permute.xlu0 %516
    %v519 = vmul.f32 %v514, %v517
    %521 = vrot.lane.b32.xlu0 %v519, 64
    %v522 = vpop.permute.xlu0 %521
    %v524 = vadd.f32 %v432, %v522
    %v525 = vtanh.pop %v524
    %v526 = vsub.f32 1.0, %v514
    %528 = vrot.lane.b32.xlu0 %v525, 96
    %v529 = vpop.permute.xlu0 %528
    %v531 = vmul.f32 %v526, %v529
    %v532 = vmul.f32 %v514, %v428
    %v533 = vadd.f32 %v531, %v532
    %vm534 = vcmp.gt.s32.totalorder %v200, 2
    %v535 = vsel %vm534, 1, 0
    %536 = vset.pattern.permute.xlu0 0
    %537 = vperm.xlu0 %536, %v535
    %v538 = vpop.permute.xlu0 %537
    %vm539 = vcmp.eq.s32.totalorder %v538, 1
    %v540 = vsel %vm539, %v533, %v428
    %v541 = vsel %vm539, %v533, 0.0
    %v542 = vadd.f32 %v430, %v541
    %v543 = vmax.f32 %v431, %v541
    %v544 = vld [vmem:[#allocation2 + $0x18] sm:$0xff]
    %546 = vrot.lane.b32.xlu0 %v540, 96
    %v547 = vpop.permute.xlu0 %546
    %v548 = vsel %vm61, %v547, 0
    %550 = vmatprep.subr.mxu0 0.0
    %551 = vmatpush1.msra.mxu0 %v201
    %552 = vmatprep.subr.mxu0 0.0
    %553 = vmatpush1.msra.mxu0 %v202
    %554 = vmatprep.subr.mxu0 0.0
    %555 = vmatpush1.msra.mxu0 %v203
    %556 = vmatprep.subr.mxu0 0.0
    %557 = vmatpush1.msra.mxu0 %v204
    %558 = vmatprep.subr.mxu0 0.0
    %559 = vmatpush1.msra.mxu0 0.0
    %560 = vmatprep.subr.mxu0 0.0
    %561 = vmatpush1.msra.mxu0 0.0
    %562 = vmatprep.subr.mxu0 0.0
    %563 = vmatpush1.msra.mxu0 0.0
    %564 = vmatprep.subr.mxu0 0.0
    %565 = vmatpush1.msra.mxu0 0.0
    %566 = vmatprep.subr.mxu0 0.0
    %567 = vmatpush1.msra.mxu0 0.0
    %568 = vmatprep.subr.mxu0 0.0
    %569 = vmatpush1.msra.mxu0 0.0
    %570 = vmatprep.subr.mxu0 0.0
    %571 = vmatpush1.msra.mxu0 0.0
    %572 = vmatprep.subr.mxu0 0.0
    %573 = vmatpush1.msra.mxu0 0.0
    %574 = vmatprep.subr.mxu0 0.0
    %575 = vmatpush1.msra.mxu0 0.0
    %576 = vmatprep.subr.mxu0 0.0
    %577 = vmatpush1.msra.mxu0 0.0
    %578 = vmatprep.subr.mxu0 0.0
    %579 = vmatpush1.msra.mxu0 0.0
    %580 = vmatprep.subr.mxu0 0.0
    %581 = vmatpush1.msra.mxu0 0.0
    %582 = vmatprep.subr.mxu0 0.0
    %583 = vmatpush1.msra.mxu0 0.0
    %584 = vmatprep.subr.mxu0 0.0
    %585 = vmatpush1.msra.mxu0 0.0
    %586 = vmatprep.subr.mxu0 0.0
    %587 = vmatpush1.msra.mxu0 0.0
    %588 = vmatprep.subr.mxu0 0.0
    %589 = vmatpush1.msra.mxu0 0.0
    %590 = vmatprep.subr.mxu0 0.0
    %591 = vmatpush1.msra.mxu0 0.0
    %592 = vmatprep.subr.mxu0 0.0
    %593 = vmatpush1.msra.mxu0 0.0
    %594 = vmatprep.subr.mxu0 0.0
    %595 = vmatpush1.msra.mxu0 0.0
    %596 = vmatprep.subr.mxu0 0.0
    %597 = vmatpush1.msra.mxu0 0.0
    %598 = vmatprep.subr.mxu0 0.0
    %599 = vmatpush1.msra.mxu0 0.0
    %600 = vmatprep.subr.mxu0 0.0
    %601 = vmatpush1.msra.mxu0 0.0
    %602 = vmatprep.subr.mxu0 0.0
    %603 = vmatpush1.msra.mxu0 0.0
    %604 = vmatprep.subr.mxu0 0.0
    %605 = vmatpush1.msra.mxu0 0.0
    %606 = vmatprep.subr.mxu0 0.0
    %607 = vmatpush1.msra.mxu0 0.0
    %608 = vmatprep.subr.mxu0 0.0
    %609 = vmatpush1.msra.mxu0 0.0
    %610 = vmatprep.subr.mxu0 0.0
    %611 = vmatpush1.msra.mxu0 0.0
    %612 = vmatprep.subr.mxu0 0.0
    %613 = vmatpush1.msra.mxu0 0.0
    %614 = vmatprep.mubr.f32.mxu0 0.0
    %615 = vmatmul.mubr.f32.gmra.mrb[0].mxu0 %v548
    %v616 = vpop.f32.mrb[0].mxu0
    %v617 = vadd.f32 %v211, %v616
    %v618 = vpop.f32.mrb[0].mxu0
    %619 = vdwg.mxu0
    %v620 = vadd.f32 %v544, %v617
    %v621 = vxor.u32 %v620, 2147483648
    %v622 = vmul.f32 %v621, 1.442695
    %v623 = vpow.pop %v622
    %v624 = vadd.f32 %v623, 1.0
    %v625 = vrcp.pop %v624
    %v626 = vmul.f32 1.0, %v625
    %628 = vrot.lane.b32.xlu0 %v617, 64
    %v629 = vpop.permute.xlu0 %628
    %v631 = vmul.f32 %v626, %v629
    %633 = vrot.lane.b32.xlu0 %v631, 64
    %v634 = vpop.permute.xlu0 %633
    %v636 = vadd.f32 %v544, %v634
    %v637 = vtanh.pop %v636
    %v638 = vsub.f32 1.0, %v626
    %640 = vrot.lane.b32.xlu0 %v637, 96
    %v641 = vpop.permute.xlu0 %640
    %v643 = vmul.f32 %v638, %v641
    %v644 = vmul.f32 %v626, %v540
    %v645 = vadd.f32 %v643, %v644
    %vm646 = vcmp.gt.s32.totalorder %v200, 3
    %v647 = vsel %vm646, 1, 0
    %648 = vset.pattern.permute.xlu0 0
    %649 = vperm.xlu0 %648, %v647
    %v650 = vpop.permute.xlu0 %649
    %vm651 = vcmp.eq.s32.totalorder %v650, 1
    %v652 = vsel %vm651, %v645, %v540
    %v653 = vsel %vm651, %v645, 0.0
    %v654 = vadd.f32 %v542, %v653
    %v655 = vmax.f32 %v543, %v653
    %v656 = vld [vmem:[#allocation2 + $0x20] sm:$0xff]
    %658 = vrot.lane.b32.xlu0 %v652, 96
    %v659 = vpop.permute.xlu0 %658
    %v660 = vsel %vm61, %v659, 0
    %662 = vmatprep.subr.mxu0 0.0
    %663 = vmatpush1.msra.mxu0 %v201
    %664 = vmatprep.subr.mxu0 0.0
    %665 = vmatpush1.msra.mxu0 %v202
    %666 = vmatprep.subr.mxu0 0.0
    %667 = vmatpush1.msra.mxu0 %v203
    %668 = vmatprep.subr.mxu0 0.0
    %669 = vmatpush1.msra.mxu0 %v204
    %670 = vmatprep.subr.mxu0 0.0
    %671 = vmatpush1.msra.mxu0 0.0
    %672 = vmatprep.subr.mxu0 0.0
    %673 = vmatpush1.msra.mxu0 0.0
    %674 = vmatprep.subr.mxu0 0.0
    %675 = vmatpush1.msra.mxu0 0.0
    %676 = vmatprep.subr.mxu0 0.0
    %677 = vmatpush1.msra.mxu0 0.0
    %678 = vmatprep.subr.mxu0 0.0
    %679 = vmatpush1.msra.mxu0 0.0
    %680 = vmatprep.subr.mxu0 0.0
    %681 = vmatpush1.msra.mxu0 0.0
    %682 = vmatprep.subr.mxu0 0.0
    %683 = vmatpush1.msra.mxu0 0.0
    %684 = vmatprep.subr.mxu0 0.0
    %685 = vmatpush1.msra.mxu0 0.0
    %686 = vmatprep.subr.mxu0 0.0
    %687 = vmatpush1.msra.mxu0 0.0
    %688 = vmatprep.subr.mxu0 0.0
    %689 = vmatpush1.msra.mxu0 0.0
    %690 = vmatprep.subr.mxu0 0.0
    %691 = vmatpush1.msra.mxu0 0.0
    %692 = vmatprep.subr.mxu0 0.0
    %693 = vmatpush1.msra.mxu0 0.0
    %694 = vmatprep.subr.mxu0 0.0
    %695 = vmatpush1.msra.mxu0 0.0
    %696 = vmatprep.subr.mxu0 0.0
    %697 = vmatpush1.msra.mxu0 0.0
    %698 = vmatprep.subr.mxu0 0.0
    %699 = vmatpush1.msra.mxu0 0.0
    %700 = vmatprep.subr.mxu0 0.0
    %701 = vmatpush1.msra.mxu0 0.0
    %702 = vmatprep.subr.mxu0 0.0
    %703 = vmatpush1.msra.mxu0 0.0
    %704 = vmatprep.subr.mxu0 0.0
    %705 = vmatpush1.msra.mxu0 0.0
    %706 = vmatprep.subr.mxu0 0.0
    %707 = vmatpush1.msra.mxu0 0.0
    %708 = vmatprep.subr.mxu0 0.0
    %709 = vmatpush1.msra.mxu0 0.0
    %710 = vmatprep.subr.mxu0 0.0
    %711 = vmatpush1.msra.mxu0 0.0
    %712 = vmatprep.subr.mxu0 0.0
    %713 = vmatpush1.msra.mxu0 0.0
    %714 = vmatprep.subr.mxu0 0.0
    %715 = vmatpush1.msra.mxu0 0.0
    %716 = vmatprep.subr.mxu0 0.0
    %717 = vmatpush1.msra.mxu0 0.0
    %718 = vmatprep.subr.mxu0 0.0
    %719 = vmatpush1.msra.mxu0 0.0
    %720 = vmatprep.subr.mxu0 0.0
    %721 = vmatpush1.msra.mxu0 0.0
    %722 = vmatprep.subr.mxu0 0.0
    %723 = vmatpush1.msra.mxu0 0.0
    %724 = vmatprep.subr.mxu0 0.0
    %725 = vmatpush1.msra.mxu0 0.0
    %726 = vmatprep.mubr.f32.mxu0 0.0
    %727 = vmatmul.mubr.f32.gmra.mrb[0].mxu0 %v660
    %v728 = vpop.f32.mrb[0].mxu0
    %v729 = vadd.f32 %v211, %v728
    %v730 = vpop.f32.mrb[0].mxu0
    %731 = vdwg.mxu0
    %v732 = vadd.f32 %v656, %v729
    %v733 = vxor.u32 %v732, 2147483648
    %v734 = vmul.f32 %v733, 1.442695
    %v735 = vpow.pop %v734
    %v736 = vadd.f32 %v735, 1.0
    %v737 = vrcp.pop %v736
    %v738 = vmul.f32 1.0, %v737
    %740 = vrot.lane.b32.xlu0 %v729, 64
    %v741 = vpop.permute.xlu0 %740
    %v743 = vmul.f32 %v738, %v741
    %745 = vrot.lane.b32.xlu0 %v743, 64
    %v746 = vpop.permute.xlu0 %745
    %v748 = vadd.f32 %v656, %v746
    %v749 = vtanh.pop %v748
    %v750 = vsub.f32 1.0, %v738
    %752 = vrot.lane.b32.xlu0 %v749, 96
    %v753 = vpop.permute.xlu0 %752
    %v755 = vmul.f32 %v750, %v753
    %v756 = vmul.f32 %v738, %v652
    %v757 = vadd.f32 %v755, %v756
    %vm758 = vcmp.gt.s32.totalorder %v200, 4
    %v759 = vsel %vm758, 1, 0
    %760 = vset.pattern.permute.xlu0 0
    %761 = vperm.xlu0 %760, %v759
    %v762 = vpop.permute.xlu0 %761
    %vm763 = vcmp.eq.s32.totalorder %v762, 1
    %v764 = vsel %vm763, %v757, %v652
    %v765 = vsel %vm763, %v757, 0.0
    %v766 = vadd.f32 %v654, %v765
    %v767 = vmax.f32 %v655, %v765
    %v768 = vld [vmem:[#allocation2 + $0x28] sm:$0xff]
    %770 = vrot.lane.b32.xlu0 %v764, 96
    %v771 = vpop.permute.xlu0 %770
    %v772 = vsel %vm61, %v771, 0
    %774 = vmatprep.subr.mxu0 0.0
    %775 = vmatpush1.msra.mxu0 %v201
    %776 = vmatprep.subr.mxu0 0.0
    %777 = vmatpush1.msra.mxu0 %v202
    %778 = vmatprep.subr.mxu0 0.0
    %779 = vmatpush1.msra.mxu0 %v203
    %780 = vmatprep.subr.mxu0 0.0
    %781 = vmatpush1.msra.mxu0 %v204
    %782 = vmatprep.subr.mxu0 0.0
    %783 = vmatpush1.msra.mxu0 0.0
    %784 = vmatprep.subr.mxu0 0.0
    %785 = vmatpush1.msra.mxu0 0.0
    %786 = vmatprep.subr.mxu0 0.0
    %787 = vmatpush1.msra.mxu0 0.0
    %788 = vmatprep.subr.mxu0 0.0
    %789 = vmatpush1.msra.mxu0 0.0
    %790 = vmatprep.subr.mxu0 0.0
    %791 = vmatpush1.msra.mxu0 0.0
    %792 = vmatprep.subr.mxu0 0.0
    %793 = vmatpush1.msra.mxu0 0.0
    %794 = vmatprep.subr.mxu0 0.0
    %795 = vmatpush1.msra.mxu0 0.0
    %796 = vmatprep.subr.mxu0 0.0
    %797 = vmatpush1.msra.mxu0 0.0
    %798 = vmatprep.subr.mxu0 0.0
    %799 = vmatpush1.msra.mxu0 0.0
    %800 = vmatprep.subr.mxu0 0.0
    %801 = vmatpush1.msra.mxu0 0.0
    %802 = vmatprep.subr.mxu0 0.0
    %803 = vmatpush1.msra.mxu0 0.0
    %804 = vmatprep.subr.mxu0 0.0
    %805 = vmatpush1.msra.mxu0 0.0
    %806 = vmatprep.subr.mxu0 0.0
    %807 = vmatpush1.msra.mxu0 0.0
    %808 = vmatprep.subr.mxu0 0.0
    %809 = vmatpush1.msra.mxu0 0.0
    %810 = vmatprep.subr.mxu0 0.0
    %811 = vmatpush1.msra.mxu0 0.0
    %812 = vmatprep.subr.mxu0 0.0
    %813 = vmatpush1.msra.mxu0 0.0
    %814 = vmatprep.subr.mxu0 0.0
    %815 = vmatpush1.msra.mxu0 0.0
    %816 = vmatprep.subr.mxu0 0.0
    %817 = vmatpush1.msra.mxu0 0.0
    %818 = vmatprep.subr.mxu0 0.0
    %819 = vmatpush1.msra.mxu0 0.0
    %820 = vmatprep.subr.mxu0 0.0
    %821 = vmatpush1.msra.mxu0 0.0
    %822 = vmatprep.subr.mxu0 0.0
    %823 = vmatpush1.msra.mxu0 0.0
    %824 = vmatprep.subr.mxu0 0.0
    %825 = vmatpush1.msra.mxu0 0.0
    %826 = vmatprep.subr.mxu0 0.0
    %827 = vmatpush1.msra.mxu0 0.0
    %828 = vmatprep.subr.mxu0 0.0
    %829 = vmatpush1.msra.mxu0 0.0
    %830 = vmatprep.subr.mxu0 0.0
    %831 = vmatpush1.msra.mxu0 0.0
    %832 = vmatprep.subr.mxu0 0.0
    %833 = vmatpush1.msra.mxu0 0.0
    %834 = vmatprep.subr.mxu0 0.0
    %835 = vmatpush1.msra.mxu0 0.0
    %836 = vmatprep.subr.mxu0 0.0
    %837 = vmatpush1.msra.mxu0 0.0
    %838 = vmatprep.mubr.f32.mxu0 0.0
    %839 = vmatmul.mubr.f32.gmra.mrb[0].mxu0 %v772
    %v840 = vpop.f32.mrb[0].mxu0
    %v841 = vadd.f32 %v211, %v840
    %v842 = vpop.f32.mrb[0].mxu0
    %843 = vdwg.mxu0
    %v844 = vadd.f32 %v768, %v841
    %v845 = vxor.u32 %v844, 2147483648
    %v846 = vmul.f32 %v845, 1.442695
    %v847 = vpow.pop %v846
    %v848 = vadd.f32 %v847, 1.0
    %v849 = vrcp.pop %v848
    %v850 = vmul.f32 1.0, %v849
    %852 = vrot.lane.b32.xlu0 %v841, 64
    %v853 = vpop.permute.xlu0 %852
    %v855 = vmul.f32 %v850, %v853
    %857 = vrot.lane.b32.xlu0 %v855, 64
    %v858 = vpop.permute.xlu0 %857
    %v860 = vadd.f32 %v768, %v858
    %v861 = vtanh.pop %v860
    %v862 = vsub.f32 1.0, %v850
    %864 = vrot.lane.b32.xlu0 %v861, 96
    %v865 = vpop.permute.xlu0 %864
    %v867 = vmul.f32 %v862, %v865
    %v868 = vmul.f32 %v850, %v764
    %v869 = vadd.f32 %v867, %v868
    %vm870 = vcmp.gt.s32.totalorder %v200, 5
    %v871 = vsel %vm870, 1, 0
    %872 = vset.pattern.permute.xlu0 0
    %873 = vperm.xlu0 %872, %v871
    %v874 = vpop.permute.xlu0 %873
    %vm875 = vcmp.eq.s32.totalorder %v874, 1
    %v876 = vsel %vm875, %v869, %v764
    %v877 = vsel %vm875, %v869, 0.0
    %v878 = vadd.f32 %v766, %v877
    %v879 = vmax.f32 %v767, %v877
    %v880 = vld [vmem:[#allocation2 + $0x30] sm:$0xff]
    %882 = vrot.lane.b32.xlu0 %v876, 96
    %v883 = vpop.permute.xlu0 %882
    %v884 = vsel %vm61, %v883, 0
    %886 = vmatprep.subr.mxu0 0.0
    %887 = vmatpush1.msra.mxu0 %v201
    %888 = vmatprep.subr.mxu0 0.0
    %889 = vmatpush1.msra.mxu0 %v202
    %890 = vmatprep.subr.mxu0 0.0
    %891 = vmatpush1.msra.mxu0 %v203
    %892 = vmatprep.subr.mxu0 0.0
    %893 = vmatpush1.msra.mxu0 %v204
    %894 = vmatprep.subr.mxu0 0.0
    %895 = vmatpush1.msra.mxu0 0.0
    %896 = vmatprep.subr.mxu0 0.0
    %897 = vmatpush1.msra.mxu0 0.0
    %898 = vmatprep.subr.mxu0 0.0
    %899 = vmatpush1.msra.mxu0 0.0
    %900 = vmatprep.subr.mxu0 0.0
    %901 = vmatpush1.msra.mxu0 0.0
    %902 = vmatprep.subr.mxu0 0.0
    %903 = vmatpush1.msra.mxu0 0.0
    %904 = vmatprep.subr.mxu0 0.0
    %905 = vmatpush1.msra.mxu0 0.0
    %906 = vmatprep.subr.mxu0 0.0
    %907 = vmatpush1.msra.mxu0 0.0
    %908 = vmatprep.subr.mxu0 0.0
    %909 = vmatpush1.msra.mxu0 0.0
    %910 = vmatprep.subr.mxu0 0.0
    %911 = vmatpush1.msra.mxu0 0.0
    %912 = vmatprep.subr.mxu0 0.0
    %913 = vmatpush1.msra.mxu0 0.0
    %914 = vmatprep.subr.mxu0 0.0
    %915 = vmatpush1.msra.mxu0 0.0
    %916 = vmatprep.subr.mxu0 0.0
    %917 = vmatpush1.msra.mxu0 0.0
    %918 = vmatprep.subr.mxu0 0.0
    %919 = vmatpush1.msra.mxu0 0.0
    %920 = vmatprep.subr.mxu0 0.0
    %921 = vmatpush1.msra.mxu0 0.0
    %922 = vmatprep.subr.mxu0 0.0
    %923 = vmatpush1.msra.mxu0 0.0
    %924 = vmatprep.subr.mxu0 0.0
    %925 = vmatpush1.msra.mxu0 0.0
    %926 = vmatprep.subr.mxu0 0.0
    %927 = vmatpush1.msra.mxu0 0.0
    %928 = vmatprep.subr.mxu0 0.0
    %929 = vmatpush1.msra.mxu0 0.0
    %930 = vmatprep.subr.mxu0 0.0
    %931 = vmatpush1.msra.mxu0 0.0
    %932 = vmatprep.subr.mxu0 0.0
    %933 = vmatpush1.msra.mxu0 0.0
    %934 = vmatprep.subr.mxu0 0.0
    %935 = vmatpush1.msra.mxu0 0.0
    %936 = vmatprep.subr.mxu0 0.0
    %937 = vmatpush1.msra.mxu0 0.0
    %938 = vmatprep.subr.mxu0 0.0
    %939 = vmatpush1.msra.mxu0 0.0
    %940 = vmatprep.subr.mxu0 0.0
    %941 = vmatpush1.msra.mxu0 0.0
    %942 = vmatprep.subr.mxu0 0.0
    %943 = vmatpush1.msra.mxu0 0.0
    %944 = vmatprep.subr.mxu0 0.0
    %945 = vmatpush1.msra.mxu0 0.0
    %946 = vmatprep.subr.mxu0 0.0
    %947 = vmatpush1.msra.mxu0 0.0
    %948 = vmatprep.subr.mxu0 0.0
    %949 = vmatpush1.msra.mxu0 0.0
    %950 = vmatprep.mubr.f32.mxu0 0.0
    %951 = vmatmul.mubr.f32.gmra.mrb[0].mxu0 %v884
    %v952 = vpop.f32.mrb[0].mxu0
    %v953 = vadd.f32 %v211, %v952
    %v954 = vpop.f32.mrb[0].mxu0
    %955 = vdwg.mxu0
    %v956 = vadd.f32 %v880, %v953
    %v957 = vxor.u32 %v956, 2147483648
    %v958 = vmul.f32 %v957, 1.442695
    %v959 = vpow.pop %v958
    %v960 = vadd.f32 %v959, 1.0
    %v961 = vrcp.pop %v960
    %v962 = vmul.f32 1.0, %v961
    %964 = vrot.lane.b32.xlu0 %v953, 64
    %v965 = vpop.permute.xlu0 %964
    %v967 = vmul.f32 %v962, %v965
    %969 = vrot.lane.b32.xlu0 %v967, 64
    %v970 = vpop.permute.xlu0 %969
    %v972 = vadd.f32 %v880, %v970
    %v973 = vtanh.pop %v972
    %v974 = vsub.f32 1.0, %v962
    %976 = vrot.lane.b32.xlu0 %v973, 96
    %v977 = vpop.permute.xlu0 %976
    %v979 = vmul.f32 %v974, %v977
    %v980 = vmul.f32 %v962, %v876
    %v981 = vadd.f32 %v979, %v980
    %vm982 = vcmp.gt.s32.totalorder %v200, 6
    %v983 = vsel %vm982, 1, 0
    %984 = vset.pattern.permute.xlu0 0
    %985 = vperm.xlu0 %984, %v983
    %v986 = vpop.permute.xlu0 %985
    %vm987 = vcmp.eq.s32.totalorder %v986, 1
    %v988 = vsel %vm987, %v981, %v876
    %v989 = vsel %vm987, %v981, 0.0
    %v990 = vadd.f32 %v878, %v989
    %v991 = vmax.f32 %v879, %v989
    %v992 = vld [vmem:[#allocation2 + $0x38] sm:$0xff]
    %994 = vrot.lane.b32.xlu0 %v988, 96
    %v995 = vpop.permute.xlu0 %994
    %v996 = vsel %vm61, %v995, 0
    %998 = vmatprep.subr.mxu0 0.0
    %999 = vmatpush1.msra.mxu0 %v201
    %1000 = vmatprep.subr.mxu0 0.0
    %1001 = vmatpush1.msra.mxu0 %v202
    %1002 = vmatprep.subr.mxu0 0.0
    %1003 = vmatpush1.msra.mxu0 %v203
    %1004 = vmatprep.subr.mxu0 0.0
    %1005 = vmatpush1.msra.mxu0 %v204
    %1006 = vmatprep.subr.mxu0 0.0
    %1007 = vmatpush1.msra.mxu0 0.0
    %1008 = vmatprep.subr.mxu0 0.0
    %1009 = vmatpush1.msra.mxu0 0.0
    %1010 = vmatprep.subr.mxu0 0.0
    %1011 = vmatpush1.msra.mxu0 0.0
    %1012 = vmatprep.subr.mxu0 0.0
    %1013 = vmatpush1.msra.mxu0 0.0
    %1014 = vmatprep.subr.mxu0 0.0
    %1015 = vmatpush1.msra.mxu0 0.0
    %1016 = vmatprep.subr.mxu0 0.0
    %1017 = vmatpush1.msra.mxu0 0.0
    %1018 = vmatprep.subr.mxu0 0.0
    %1019 = vmatpush1.msra.mxu0 0.0
    %1020 = vmatprep.subr.mxu0 0.0
    %1021 = vmatpush1.msra.mxu0 0.0
    %1022 = vmatprep.subr.mxu0 0.0
    %1023 = vmatpush1.msra.mxu0 0.0
    %1024 = vmatprep.subr.mxu0 0.0
    %1025 = vmatpush1.msra.mxu0 0.0
    %1026 = vmatprep.subr.mxu0 0.0
    %1027 = vmatpush1.msra.mxu0 0.0
    %1028 = vmatprep.subr.mxu0 0.0
    %1029 = vmatpush1.msra.mxu0 0.0
    %1030 = vmatprep.subr.mxu0 0.0
    %1031 = vmatpush1.msra.mxu0 0.0
    %1032 = vmatprep.subr.mxu0 0.0
    %1033 = vmatpush1.msra.mxu0 0.0
    %1034 = vmatprep.subr.mxu0 0.0
    %1035 = vmatpush1.msra.mxu0 0.0
    %1036 = vmatprep.subr.mxu0 0.0
    %1037 = vmatpush1.msra.mxu0 0.0
    %1038 = vmatprep.subr.mxu0 0.0
    %1039 = vmatpush1.msra.mxu0 0.0
    %1040 = vmatprep.subr.mxu0 0.0
    %1041 = vmatpush1.msra.mxu0 0.0
    %1042 = vmatprep.subr.mxu0 0.0
    %1043 = vmatpush1.msra.mxu0 0.0
    %1044 = vmatprep.subr.mxu0 0.0
    %1045 = vmatpush1.msra.mxu0 0.0
    %1046 = vmatprep.subr.mxu0 0.0
    %1047 = vmatpush1.msra.mxu0 0.0
    %1048 = vmatprep.subr.mxu0 0.0
    %1049 = vmatpush1.msra.mxu0 0.0
    %1050 = vmatprep.subr.mxu0 0.0
    %1051 = vmatpush1.msra.mxu0 0.0
    %1052 = vmatprep.subr.mxu0 0.0
    %1053 = vmatpush1.msra.mxu0 0.0
    %1054 = vmatprep.subr.mxu0 0.0
    %1055 = vmatpush1.msra.mxu0 0.0
    %1056 = vmatprep.subr.mxu0 0.0
    %1057 = vmatpush1.msra.mxu0 0.0
    %1058 = vmatprep.subr.mxu0 0.0
    %1059 = vmatpush1.msra.mxu0 0.0
    %1060 = vmatprep.subr.mxu0 0.0
    %1061 = vmatpush1.msra.mxu0 0.0
    %1062 = vmatprep.mubr.f32.mxu0 0.0
    %1063 = vmatmul.mubr.f32.gmra.mrb[0].mxu0 %v996
    %v1064 = vpop.f32.mrb[0].mxu0
    %v1065 = vadd.f32 %v211, %v1064
    %v1066 = vpop.f32.mrb[0].mxu0
    %1067 = vdwg.mxu0
    %v1068 = vadd.f32 %v992, %v1065
    %v1069 = vxor.u32 %v1068, 2147483648
    %v1070 = vmul.f32 %v1069, 1.442695
    %v1071 = vpow.pop %v1070
    %v1072 = vadd.f32 %v1071, 1.0
    %v1073 = vrcp.pop %v1072
    %v1074 = vmul.f32 1.0, %v1073
    %1076 = vrot.lane.b32.xlu0 %v1065, 64
    %v1077 = vpop.permute.xlu0 %1076
    %v1079 = vmul.f32 %v1074, %v1077
    %1081 = vrot.lane.b32.xlu0 %v1079, 64
    %v1082 = vpop.permute.xlu0 %1081
    %v1084 = vadd.f32 %v992, %v1082
    %v1085 = vtanh.pop %v1084
    %v1086 = vsub.f32 1.0, %v1074
    %1088 = vrot.lane.b32.xlu0 %v1085, 96
    %v1089 = vpop.permute.xlu0 %1088
    %v1091 = vmul.f32 %v1086, %v1089
    %v1092 = vmul.f32 %v1074, %v988
    %v1093 = vadd.f32 %v1091, %v1092
    %vm1094 = vcmp.gt.s32.totalorder %v200, 7
    %v1095 = vsel %vm1094, 1, 0
    %1096 = vset.pattern.permute.xlu0 0
    %1097 = vperm.xlu0 %1096, %v1095
    %v1098 = vpop.permute.xlu0 %1097
    %vm1099 = vcmp.eq.s32.totalorder %v1098, 1
    %v1100 = vsel %vm1099, %v1093, %v988
    %v1101 = vsel %vm1099, %v1093, 0.0
    %v1102 = vadd.f32 %v990, %v1101
    %v1103 = vmax.f32 %v991, %v1101
    %v1104 = vmul.f32 %v1102, 0.125
    %v1105 = vld [vmem:[%s6] sm:$0xff]
    %v1106 = vld [vmem:[%s6 + $0x8] sm:$0xff]
    %v1107 = vld [vmem:[%s6 + $0x10] sm:$0xff]
    %v1108 = vld [vmem:[%s6 + $0x18] sm:$0xff]
    %s1109 = scalar_lea.vmem %s6, 32
    %v1110 = vld [vmem:[%s1109] sm:$0xff]
    %v1111 = vld [vmem:[%s1109 + $0x8] sm:$0xff]
    %v1112 = vld [vmem:[%s1109 + $0x10] sm:$0xff]
    %v1113 = vld [vmem:[%s1109 + $0x18] sm:$0xff]
    %1115 = vrot.lane.b32.xlu0 %v1104, 96
    %v1116 = vpop.permute.xlu0 %1115
    %v1117 = vsel %vm61, %v1116, 0
    %1119 = vmatprep.subr.mxu0 0.0
    %1120 = vmatpush1.msra.mxu0 %v1110
    %1121 = vmatprep.subr.mxu0 0.0
    %1122 = vmatpush1.msra.mxu0 %v1111
    %1123 = vmatprep.subr.mxu0 0.0
    %1124 = vmatpush1.msra.mxu0 %v1112
    %1125 = vmatprep.subr.mxu0 0.0
    %1126 = vmatpush1.msra.mxu0 %v1113
    %1127 = vmatprep.subr.mxu0 0.0
    %1128 = vmatpush1.msra.mxu0 0.0
    %1129 = vmatprep.subr.mxu0 0.0
    %1130 = vmatpush1.msra.mxu0 0.0
    %1131 = vmatprep.subr.mxu0 0.0
    %1132 = vmatpush1.msra.mxu0 0.0
    %1133 = vmatprep.subr.mxu0 0.0
    %1134 = vmatpush1.msra.mxu0 0.0
    %1135 = vmatprep.subr.mxu0 0.0
    %1136 = vmatpush1.msra.mxu0 0.0
    %1137 = vmatprep.subr.mxu0 0.0
    %1138 = vmatpush1.msra.mxu0 0.0
    %1139 = vmatprep.subr.mxu0 0.0
    %1140 = vmatpush1.msra.mxu0 0.0
    %1141 = vmatprep.subr.mxu0 0.0
    %1142 = vmatpush1.msra.mxu0 0.0
    %1143 = vmatprep.subr.mxu0 0.0
    %1144 = vmatpush1.msra.mxu0 0.0
    %1145 = vmatprep.subr.mxu0 0.0
    %1146 = vmatpush1.msra.mxu0 0.0
    %1147 = vmatprep.subr.mxu0 0.0
    %1148 = vmatpush1.msra.mxu0 0.0
    %1149 = vmatprep.subr.mxu0 0.0
    %1150 = vmatpush1.msra.mxu0 0.0
    %1151 = vmatprep.subr.mxu0 0.0
    %1152 = vmatpush1.msra.mxu0 0.0
    %1153 = vmatprep.subr.mxu0 0.0
    %1154 = vmatpush1.msra.mxu0 0.0
    %1155 = vmatprep.subr.mxu0 0.0
    %1156 = vmatpush1.msra.mxu0 0.0
    %1157 = vmatprep.subr.mxu0 0.0
    %1158 = vmatpush1.msra.mxu0 0.0
    %1159 = vmatprep.subr.mxu0 0.0
    %1160 = vmatpush1.msra.mxu0 0.0
    %1161 = vmatprep.subr.mxu0 0.0
    %1162 = vmatpush1.msra.mxu0 0.0
    %1163 = vmatprep.subr.mxu0 0.0
    %1164 = vmatpush1.msra.mxu0 0.0
    %1165 = vmatprep.subr.mxu0 0.0
    %1166 = vmatpush1.msra.mxu0 0.0
    %1167 = vmatprep.subr.mxu0 0.0
    %1168 = vmatpush1.msra.mxu0 0.0
    %1169 = vmatprep.subr.mxu0 0.0
    %1170 = vmatpush1.msra.mxu0 0.0
    %1171 = vmatprep.subr.mxu0 0.0
    %1172 = vmatpush1.msra.mxu0 0.0
    %1173 = vmatprep.subr.mxu0 0.0
    %1174 = vmatpush1.msra.mxu0 0.0
    %1175 = vmatprep.subr.mxu0 0.0
    %1176 = vmatpush1.msra.mxu0 0.0
    %1177 = vmatprep.subr.mxu0 0.0
    %1178 = vmatpush1.msra.mxu0 0.0
    %1179 = vmatprep.subr.mxu0 0.0
    %1180 = vmatpush1.msra.mxu0 0.0
    %1181 = vmatprep.subr.mxu0 0.0
    %1182 = vmatpush1.msra.mxu0 0.0
    %1183 = vmatprep.mubr.f32.mxu0 0.0
    %1184 = vmatmul.mubr.f32.gmra.mrb[0].mxu0 %v1117
    %v1185 = vpop.f32.mrb[0].mxu0
    %v1186 = vadd.f32 0.0, %v1185
    %v1187 = vpop.f32.mrb[0].mxu0
    %1188 = vdwg.mxu0
    %1190 = vrot.lane.b32.xlu0 %v1100, 96
    %v1191 = vpop.permute.xlu0 %1190
    %v1192 = vsel %vm61, %v1191, 0
    %1194 = vmatprep.subr.mxu0 0.0
    %1195 = vmatpush1.msra.mxu0 %v1105
    %1196 = vmatprep.subr.mxu0 0.0
    %1197 = vmatpush1.msra.mxu0 %v1106
    %1198 = vmatprep.subr.mxu0 0.0
    %1199 = vmatpush1.msra.mxu0 %v1107
    %1200 = vmatprep.subr.mxu0 0.0
    %1201 = vmatpush1.msra.mxu0 %v1108
    %1202 = vmatprep.subr.mxu0 0.0
    %1203 = vmatpush1.msra.mxu0 0.0
    %1204 = vmatprep.subr.mxu0 0.0
    %1205 = vmatpush1.msra.mxu0 0.0
    %1206 = vmatprep.subr.mxu0 0.0
    %1207 = vmatpush1.msra.mxu0 0.0
    %1208 = vmatprep.subr.mxu0 0.0
    %1209 = vmatpush1.msra.mxu0 0.0
    %1210 = vmatprep.subr.mxu0 0.0
    %1211 = vmatpush1.msra.mxu0 0.0
    %1212 = vmatprep.subr.mxu0 0.0
    %1213 = vmatpush1.msra.mxu0 0.0
    %1214 = vmatprep.subr.mxu0 0.0
    %1215 = vmatpush1.msra.mxu0 0.0
    %1216 = vmatprep.subr.mxu0 0.0
    %1217 = vmatpush1.msra.mxu0 0.0
    %1218 = vmatprep.subr.mxu0 0.0
    %1219 = vmatpush1.msra.mxu0 0.0
    %1220 = vmatprep.subr.mxu0 0.0
    %1221 = vmatpush1.msra.mxu0 0.0
    %1222 = vmatprep.subr.mxu0 0.0
    %1223 = vmatpush1.msra.mxu0 0.0
    %1224 = vmatprep.subr.mxu0 0.0
    %1225 = vmatpush1.msra.mxu0 0.0
    %1226 = vmatprep.subr.mxu0 0.0
    %1227 = vmatpush1.msra.mxu0 0.0
    %1228 = vmatprep.subr.mxu0 0.0
    %1229 = vmatpush1.msra.mxu0 0.0
    %1230 = vmatprep.subr.mxu0 0.0
    %1231 = vmatpush1.msra.mxu0 0.0
    %1232 = vmatprep.subr.mxu0 0.0
    %1233 = vmatpush1.msra.mxu0 0.0
    %1234 = vmatprep.subr.mxu0 0.0
    %1235 = vmatpush1.msra.mxu0 0.0
    %1236 = vmatprep.subr.mxu0 0.0
    %1237 = vmatpush1.msra.mxu0 0.0
    %1238 = vmatprep.subr.mxu0 0.0
    %1239 = vmatpush1.msra.mxu0 0.0
    %1240 = vmatprep.subr.mxu0 0.0
    %1241 = vmatpush1.msra.mxu0 0.0
    %1242 = vmatprep.subr.mxu0 0.0
    %1243 = vmatpush1.msra.mxu0 0.0
    %1244 = vmatprep.subr.mxu0 0.0
    %1245 = vmatpush1.msra.mxu0 0.0
    %1246 = vmatprep.subr.mxu0 0.0
    %1247 = vmatpush1.msra.mxu0 0.0
    %1248 = vmatprep.subr.mxu0 0.0
    %1249 = vmatpush1.msra.mxu0 0.0
    %1250 = vmatprep.subr.mxu0 0.0
    %1251 = vmatpush1.msra.mxu0 0.0
    %1252 = vmatprep.subr.mxu0 0.0
    %1253 = vmatpush1.msra.mxu0 0.0
    %1254 = vmatprep.subr.mxu0 0.0
    %1255 = vmatpush1.msra.mxu0 0.0
    %1256 = vmatprep.subr.mxu0 0.0
    %1257 = vmatpush1.msra.mxu0 0.0
    %1258 = vmatprep.mubr.f32.mxu0 0.0
    %1259 = vmatmul.mubr.f32.gmra.mrb[0].mxu0 %v1192
    %v1260 = vpop.f32.mrb[0].mxu0
    %v1261 = vadd.f32 %v1186, %v1260
    %v1262 = vpop.f32.mrb[0].mxu0
    %1263 = vdwg.mxu0
    %s1264 = scalar_lea.vmem %s6, 64
    %v1265 = vld [vmem:[%s1264] sm:$0xff]
    %v1266 = vld [vmem:[%s1264 + $0x8] sm:$0xff]
    %v1267 = vld [vmem:[%s1264 + $0x10] sm:$0xff]
    %v1268 = vld [vmem:[%s1264 + $0x18] sm:$0xff]
    %1270 = vrot.lane.b32.xlu0 %v1103, 96
    %v1271 = vpop.permute.xlu0 %1270
    %v1272 = vsel %vm61, %v1271, 0
    %1274 = vmatprep.subr.mxu0 0.0
    %1275 = vmatpush1.msra.mxu0 %v1265
    %1276 = vmatprep.subr.mxu0 0.0
    %1277 = vmatpush1.msra.mxu0 %v1266
    %1278 = vmatprep.subr.mxu0 0.0
    %1279 = vmatpush1.msra.mxu0 %v1267
    %1280 = vmatprep.subr.mxu0 0.0
    %1281 = vmatpush1.msra.mxu0 %v1268
    %1282 = vmatprep.subr.mxu0 0.0
    %1283 = vmatpush1.msra.mxu0 0.0
    %1284 = vmatprep.subr.mxu0 0.0
    %1285 = vmatpush1.msra.mxu0 0.0
    %1286 = vmatprep.subr.mxu0 0.0
    %1287 = vmatpush1.msra.mxu0 0.0
    %1288 = vmatprep.subr.mxu0 0.0
    %1289 = vmatpush1.msra.mxu0 0.0
    %1290 = vmatprep.subr.mxu0 0.0
    %1291 = vmatpush1.msra.mxu0 0.0
    %1292 = vmatprep.subr.mxu0 0.0
    %1293 = vmatpush1.msra.mxu0 0.0
    %1294 = vmatprep.subr.mxu0 0.0
    %1295 = vmatpush1.msra.mxu0 0.0
    %1296 = vmatprep.subr.mxu0 0.0
    %1297 = vmatpush1.msra.mxu0 0.0
    %1298 = vmatprep.subr.mxu0 0.0
    %1299 = vmatpush1.msra.mxu0 0.0
    %1300 = vmatprep.subr.mxu0 0.0
    %1301 = vmatpush1.msra.mxu0 0.0
    %1302 = vmatprep.subr.mxu0 0.0
    %1303 = vmatpush1.msra.mxu0 0.0
    %1304 = vmatprep.subr.mxu0 0.0
    %1305 = vmatpush1.msra.mxu0 0.0
    %1306 = vmatprep.subr.mxu0 0.0
    %1307 = vmatpush1.msra.mxu0 0.0
    %1308 = vmatprep.subr.mxu0 0.0
    %1309 = vmatpush1.msra.mxu0 0.0
    %1310 = vmatprep.subr.mxu0 0.0
    %1311 = vmatpush1.msra.mxu0 0.0
    %1312 = vmatprep.subr.mxu0 0.0
    %1313 = vmatpush1.msra.mxu0 0.0
    %1314 = vmatprep.subr.mxu0 0.0
    %1315 = vmatpush1.msra.mxu0 0.0
    %1316 = vmatprep.subr.mxu0 0.0
    %1317 = vmatpush1.msra.mxu0 0.0
    %1318 = vmatprep.subr.mxu0 0.0
    %1319 = vmatpush1.msra.mxu0 0.0
    %1320 = vmatprep.subr.mxu0 0.0
    %1321 = vmatpush1.msra.mxu0 0.0
    %1322 = vmatprep.subr.mxu0 0.0
    %1323 = vmatpush1.msra.mxu0 0.0
    %1324 = vmatprep.subr.mxu0 0.0
    %1325 = vmatpush1.msra.mxu0 0.0
    %1326 = vmatprep.subr.mxu0 0.0
    %1327 = vmatpush1.msra.mxu0 0.0
    %1328 = vmatprep.subr.mxu0 0.0
    %1329 = vmatpush1.msra.mxu0 0.0
    %1330 = vmatprep.subr.mxu0 0.0
    %1331 = vmatpush1.msra.mxu0 0.0
    %1332 = vmatprep.subr.mxu0 0.0
    %1333 = vmatpush1.msra.mxu0 0.0
    %1334 = vmatprep.subr.mxu0 0.0
    %1335 = vmatpush1.msra.mxu0 0.0
    %1336 = vmatprep.subr.mxu0 0.0
    %1337 = vmatpush1.msra.mxu0 0.0
    %1338 = vmatprep.mubr.f32.mxu0 0.0
    %1339 = vmatmul.mubr.f32.gmra.mrb[0].mxu0 %v1272
    %v1340 = vpop.f32.mrb[0].mxu0
    %v1341 = vadd.f32 0.0, %v1340
    %v1342 = vpop.f32.mrb[0].mxu0
    %1343 = vdwg.mxu0
    %v1344 = vadd.f32 %v1261, %v1341
    %v1345 = vld [vmem:[%s7] sm:$0x1]
    %v1347 = vlaneseq
    %v1348 = vshrl.u32 %v1347, 7
    %v1349 = vsub.s32 0, %v1348
    %v1350 = vrot.slane %v1345, %v1349
    %v1352 = vadd.f32 %v1344, %v1350
    %v1353 = vtanh.pop %v1352
    %vm1354 = vcmask 523264
    %v1355 = vsel %vm1354, %v1353, 0.0
    %v1356 = vrot.slane %v1355, 4
    %v1357 = vadd.f32 %v1355, %v1356
    %v1358 = vrot.slane %v1357, 2
    %v1359 = vadd.f32 %v1357, %v1358
    %v1360 = vrot.slane %v1359, 1
    %v1361 = vadd.f32 %v1359, %v1360
    %v1362 = vrcp.pop 8.0
    %v1363 = vmul.f32 %v1361, %v1362
    %v1364 = vsub.f32 %v1353, %v1363
    %v1365 = vmul.f32 %v1364, %v1364
    %v1366 = vsel %vm1354, %v1365, 0.0
    %v1367 = vrot.slane %v1366, 4
    %v1368 = vadd.f32 %v1366, %v1367
    %v1369 = vrot.slane %v1368, 2
    %v1370 = vadd.f32 %v1368, %v1369
    %v1371 = vrot.slane %v1370, 1
    %v1372 = vadd.f32 %v1370, %v1371
    %v1373 = vmul.f32 %v1372, %v1362
    %v1374 = vadd.f32 %v1373, 1e-05
    %v1375 = vrsqrt.pop %v1374
    %v1376 = vmul.f32 %v1364, %v1375
    %v1377 = vld [vmem:[%s8] sm:$0x1]
    %v1379 = vlaneseq
    %v1380 = vshrl.u32 %v1379, 7
    %v1381 = vsub.s32 0, %v1380
    %v1382 = vrot.slane %v1377, %v1381
    %v1384 = vmul.f32 %v1376, %v1382
    %v1385 = vld [vmem:[%s9] sm:$0x1]
    %v1387 = vlaneseq
    %v1388 = vshrl.u32 %v1387, 7
    %v1389 = vsub.s32 0, %v1388
    %v1390 = vrot.slane %v1385, %v1389
    %v1392 = vadd.f32 %v1384, %v1390
    %v1393 = vld [vmem:[%s10] sm:$0xff]
    %v1394 = vld [vmem:[%s10 + $0x8] sm:$0xff]
    %v1395 = vld [vmem:[%s10 + $0x10] sm:$0xff]
    %v1396 = vld [vmem:[%s10 + $0x18] sm:$0xff]
    %v1397 = vld [vmem:[%s10 + $0x20] sm:$0xff]
    %v1398 = vld [vmem:[%s10 + $0x28] sm:$0xff]
    %v1399 = vld [vmem:[%s10 + $0x30] sm:$0xff]
    %v1400 = vld [vmem:[%s10 + $0x38] sm:$0xff]
    %v1401 = vld [vmem:[%s11] sm:$0x1]
    %v1403 = vlaneseq
    %v1404 = vshrl.u32 %v1403, 7
    %v1405 = vsub.s32 0, %v1404
    %v1406 = vrot.slane %v1401, %v1405
    %v1409 = vsel %vm1354, %v1392, 0
    %1411 = vmatprep.subr.mxu0 0.0
    %1412 = vmatpush1.msra.mxu0 %v1393
    %1413 = vmatprep.subr.mxu0 0.0
    %1414 = vmatpush1.msra.mxu0 %v1394
    %1415 = vmatprep.subr.mxu0 0.0
    %1416 = vmatpush1.msra.mxu0 %v1395
    %1417 = vmatprep.subr.mxu0 0.0
    %1418 = vmatpush1.msra.mxu0 %v1396
    %1419 = vmatprep.subr.mxu0 0.0
    %1420 = vmatpush1.msra.mxu0 %v1397
    %1421 = vmatprep.subr.mxu0 0.0
    %1422 = vmatpush1.msra.mxu0 %v1398
    %1423 = vmatprep.subr.mxu0 0.0
    %1424 = vmatpush1.msra.mxu0 %v1399
    %1425 = vmatprep.subr.mxu0 0.0
    %1426 = vmatpush1.msra.mxu0 %v1400
    %1427 = vmatprep.subr.mxu0 0.0
    %1428 = vmatpush1.msra.mxu0 0.0
    %1429 = vmatprep.subr.mxu0 0.0
    %1430 = vmatpush1.msra.mxu0 0.0
    %1431 = vmatprep.subr.mxu0 0.0
    %1432 = vmatpush1.msra.mxu0 0.0
    %1433 = vmatprep.subr.mxu0 0.0
    %1434 = vmatpush1.msra.mxu0 0.0
    %1435 = vmatprep.subr.mxu0 0.0
    %1436 = vmatpush1.msra.mxu0 0.0
    %1437 = vmatprep.subr.mxu0 0.0
    %1438 = vmatpush1.msra.mxu0 0.0
    %1439 = vmatprep.subr.mxu0 0.0
    %1440 = vmatpush1.msra.mxu0 0.0
    %1441 = vmatprep.subr.mxu0 0.0
    %1442 = vmatpush1.msra.mxu0 0.0
    %1443 = vmatprep.subr.mxu0 0.0
    %1444 = vmatpush1.msra.mxu0 0.0
    %1445 = vmatprep.subr.mxu0 0.0
    %1446 = vmatpush1.msra.mxu0 0.0
    %1447 = vmatprep.subr.mxu0 0.0
    %1448 = vmatpush1.msra.mxu0 0.0
    %1449 = vmatprep.subr.mxu0 0.0
    %1450 = vmatpush1.msra.mxu0 0.0
    %1451 = vmatprep.subr.mxu0 0.0
    %1452 = vmatpush1.msra.mxu0 0.0
    %1453 = vmatprep.subr.mxu0 0.0
    %1454 = vmatpush1.msra.mxu0 0.0
    %1455 = vmatprep.subr.mxu0 0.0
    %1456 = vmatpush1.msra.mxu0 0.0
    %1457 = vmatprep.subr.mxu0 0.0
    %1458 = vmatpush1.msra.mxu0 0.0
    %1459 = vmatprep.subr.mxu0 0.0
    %1460 = vmatpush1.msra.mxu0 0.0
    %1461 = vmatprep.subr.mxu0 0.0
    %1462 = vmatpush1.msra.mxu0 0.0
    %1463 = vmatprep.subr.mxu0 0.0
    %1464 = vmatpush1.msra.mxu0 0.0
    %1465 = vmatprep.subr.mxu0 0.0
    %1466 = vmatpush1.msra.mxu0 0.0
    %1467 = vmatprep.subr.mxu0 0.0
    %1468 = vmatpush1.msra.mxu0 0.0
    %1469 = vmatprep.subr.mxu0 0.0
    %1470 = vmatpush1.msra.mxu0 0.0
    %1471 = vmatprep.subr.mxu0 0.0
    %1472 = vmatpush1.msra.mxu0 0.0
    %1473 = vmatprep.subr.mxu0 0.0
    %1474 = vmatpush1.msra.mxu0 0.0
    %1475 = vmatprep.mubr.f32.mxu0 0.0
    %1476 = vmatmul.mubr.f32.gmra.mrb[0].mxu0 %v1409
    %v1477 = vpop.f32.mrb[0].mxu0
    %v1478 = vadd.f32 %v1406, %v1477
    %v1479 = vpop.f32.mrb[0].mxu0
    %1480 = vdwg.mxu0
    %vm1481 = vcmask 64512
    %v1482 = vsel %vm1481, %v1478, -inf
    %1483 = vmax.xlane.f32.xlu0 %v1482
    %v1484 = vpop.xlane.xlu0 %1483
    %v1485 = vsub.f32 %v1478, %v1484
    %v1486 = vmul.f32 %v1485, 1.442695
    %v1487 = vpow.pop %v1486
    %v1488 = vsel %vm1481, %v1487, 0.0
    %1489 = vadd.xlane.f32.xlu0 %v1488
    %v1490 = vpop.xlane.xlu0 %1489
    %v1491 = vlog2.pop %v1490
    %v1492 = vmul.f32 %v1491, 0.6931472
    %v1493 = vadd.f32 %v1484, %v1492
    %v1494 = vsub.f32 %v1478, %v1493
    %1495 = vst.msk [vmem:[#allocation3] sm:$0xff] %vm1481, %v1494
    // Predicated region
    $region50: #{tpu_custom_call.1} parent=1 // pred_check
      _
    $region51: #{tpu_custom_call.1} parent=1 // pred_check_branch
      %1497 = sbr.rel (0) target = $region53
    $region52: #{tpu_custom_call.1} parent=1 // pred_region
      %s1499 = ssub.s32 128, 128
      %1500 = vsyncadd [#allocation4], %s1499
      %s1502 = sshll.u32 [#allocation3], 4
      %s1503 = int_to_ptr.vmem [resolvable:$true] %s1502
      %1505 = dma.vmem_to_hbm [thread:$0]  %s1503, 128, %s12, [#allocation4]
    $region53: #{tpu_custom_call.1} parent=1 // pred_fallthru
      _
    // Predicated region
    $region54: #{tpu_custom_call.1} parent=1 // pred_check
      _
    $region55: #{tpu_custom_call.1} parent=1 // pred_check_branch
      %1507 = sbr.rel (0) target = $region57
    $region56: #{tpu_custom_call.1} parent=1 // pred_region
      %1508 = dma.done [#allocation4], 128
    $region57: #{tpu_custom_call.1} parent=1 // pred_fallthru
      _
    %1509 = vsyncpa [#allocation4], 1

</llo_original>
